<compile_context>
chip_gen: v6e
topology: v6e:2x2x1
jax: 0.10.0
libtpu: 0.0.40
codegen_flags: <defaults>
</compile_context>

<pallas_src>
import math
import numpy as np
import jax
import jax.numpy as jnp
from jax.experimental import pallas as pl
from jax.experimental.pallas import tpu as pltpu


def _tensorcores_per_chip() -> int:
    """Best-effort TensorCores-per-chip detection (v7x: 2, v5e/v6e: 1)."""
    try:
        kind = jax.devices()[0].device_kind.lower()
    except Exception:
        return 1
    if "v7" in kind or "7x" in kind:
        return 2
    return 1


def _attend_and_project(qp, kp, vp, wo_ref, bo_ref, o_ref, ctx_ref,
                        *, batch_block, seq, n_head, d_k, is_causal):
    """Shared per-head attention + output projection.

    qp/kp/vp: (batch_block*seq, E) float32 projected activations; the 1/sqrt(d_k)
    score scale is already folded into qp (via Wq/bq). Per-head context vectors are
    written straight into lane slices of the (rows, E) VMEM scratch `ctx_ref`
    (no jnp.stack / concatenate relayouts), which then feeds a single lane-dense
    Wo matmul.
    """
    E = n_head * d_k
    neg_big = -1e30  # plain Python float -> constant created inside the trace

    # (rows, E) -> (Bblk, S, E): layout-preserving leading-dim split.
    qp3 = qp.reshape(batch_block, seq, E)
    kp3 = kp.reshape(batch_block, seq, E)
    vp3 = vp.reshape(batch_block, seq, E)

    if is_causal:
        row = jax.lax.broadcasted_iota(jnp.int32, (seq, seq), 0)
        col = jax.lax.broadcasted_iota(jnp.int32, (seq, seq), 1)
        causal = (col > row)[None, :, :]  # built once, reused for every head

    for h in range(n_head):  # unrolled: n_head is a small static constant
        lo = h * d_k
        hi = lo + d_k
        qh = qp3[:, :, lo:hi]          # (Bblk, S, d_k), f32
        kh = kp3[:, :, lo:hi]
        vh = vp3[:, :, lo:hi]

        # scores: contraction directly over d_k (no explicit K transpose);
        # kept in f32 so the softmax input stays at reference accuracy.
        att = jnp.einsum("bqd,bkd->bqk", qh, kh,
                         preferred_element_type=jnp.float32)  # (Bblk, S, S)
        if is_causal:
            att = jnp.where(causal, neg_big, att)

        att_max = jnp.max(att, axis=-1, keepdims=True)
        att_exp = jnp.exp(att - att_max)
        att_p = att_exp / jnp.sum(att_exp, axis=-1, keepdims=True)  # exact divide

        # TODO(synk): nn.Dropout on the attention weights is identity at
        # inference / dropout=0.0; stochastic dropout is not implemented here.

        # attention-weighted values on the native bf16 MXU path (f32 accumulation).
        ctx = jnp.einsum("bqk,bkd->bqd",
                         att_p.astype(jnp.bfloat16),
                         vh.astype(jnp.bfloat16),
                         preferred_element_type=jnp.float32)   # (Bblk, S, d_k)

        # write this head's context straight into its lane slice of the scratch.
        ctx_ref[:, lo:hi] = ctx.reshape(batch_block * seq, d_k)

    # output projection: one lane-dense (rows, E) @ (E, E) matmul.
    out = jnp.dot(ctx_ref[...].astype(jnp.bfloat16),
                  wo_ref[...].astype(jnp.bfloat16),
                  preferred_element_type=jnp.float32) + bo_ref[...]
    o_ref[...] = out.astype(o_ref.dtype)


def make_mha_kernel_fused(batch_block, seq, n_head, d_k, is_causal):
    """Self-attention variant (q is k is v): single activation + fused (E, 3E) QKV matmul.

    Ref shapes: x (rows, E), wqkv (E, 3E), bqkv (1, 3E), wo (E, E), bo (1, E),
    out (rows, E), ctx scratch (rows, E).  Wq/bq columns are pre-scaled by 1/sqrt(d_k).
    """
    E = n_head * d_k

    def kernel(x_ref, wqkv_ref, bqkv_ref, wo_ref, bo_ref, o_ref, ctx_ref):
        x = x_ref[...].astype(jnp.bfloat16)
        qkv = jnp.dot(x, wqkv_ref[...].astype(jnp.bfloat16),
                      preferred_element_type=jnp.float32) + bqkv_ref[...]
        qp = qkv[:, 0 * E:1 * E]
        kp = qkv[:, 1 * E:2 * E]
        vp = qkv[:, 2 * E:3 * E]
        _attend_and_project(qp, kp, vp, wo_ref, bo_ref, o_ref, ctx_ref,
                            batch_block=batch_block, seq=seq,
                            n_head=n_head, d_k=d_k, is_causal=is_causal)

    return kernel


def make_mha_kernel_general(batch_block, seq, n_head, d_k, is_causal):
    """General variant (separate q/k/v activations): three projection matmuls."""

    def kernel(q_ref, k_ref, v_ref,
               wq_ref, bq_ref, wk_ref, bk_ref, wv_ref, bv_ref,
               wo_ref, bo_ref, o_ref, ctx_ref):
        def proj(x_ref, w_ref, b_ref):
            return jnp.dot(x_ref[...].astype(jnp.bfloat16),
                           w_ref[...].astype(jnp.bfloat16),
                           preferred_element_type=jnp.float32) + b_ref[...]

        qp = proj(q_ref, wq_ref, bq_ref)   # Wq/bq pre-scaled by 1/sqrt(d_k)
        kp = proj(k_ref, wk_ref, bk_ref)
        vp = proj(v_ref, wv_ref, bv_ref)
        _attend_and_project(qp, kp, vp, wo_ref, bo_ref, o_ref, ctx_ref,
                            batch_block=batch_block, seq=seq,
                            n_head=n_head, d_k=d_k, is_causal=is_causal)

    return kernel


def multi_head_attention(q, k, v, params, n_head: int, is_causal: bool = False,
                         batch_block=None):
    """q, k, v: (B, S, E). params: dict of PyTorch-convention Linear params."""
    B, S, E = q.shape
    assert E % n_head == 0
    d_k = E // n_head
    scale = 1.0 / math.sqrt(d_k)

    if batch_block is None:
        # v7x has 2 TensorCores: split the batch across a 2-step "parallel" grid so the
        # second core is not idle; v5e/v6e keep the whole batch in one grid step.
        batch_block = max(1, B // _tensorcores_per_chip())
    assert B % batch_block == 0    # TODO(synk): ragged batch blocking not handled
    n_blocks = B // batch_block
    rows = batch_block * S

    # PyTorch (out, in) weights -> x @ W convention; fold 1/sqrt(d_k) into Wq/bq.
    wq = params["wq"].T * scale
    bq = (params["bq"] * scale).reshape(1, E)
    wk = params["wk"].T
    bk = params["bk"].reshape(1, E)
    wv = params["wv"].T
    bv = params["bv"].reshape(1, E)
    wo = params["wo"].T
    bo = params["bo"].reshape(1, E)

    x_spec = pl.BlockSpec((rows, E), lambda i: (i, 0))
    wo_spec = pl.BlockSpec((E, E), lambda i: (0, 0))
    bo_spec = pl.BlockSpec((1, E), lambda i: (0, 0))
    out_spec = pl.BlockSpec((rows, E), lambda i: (i, 0))
    scratch = [pltpu.VMEM((rows, E), jnp.float32)]   # per-head context, merged in place

    # Advisory cost estimate: QKV projections + scores + weighted values + out proj.
    flops = (2 * (B * S) * E * (3 * E)
             + 2 * 2 * B * n_head * S * S * d_k
             + 2 * (B * S) * E * E)
    cost = pl.CostEstimate(
        flops=flops,
        transcendentals=B * n_head * S * S,               # exp in softmax
        bytes_accessed=4 * (2 * B * S * E + 4 * E * E + 4 * E),
    )
    cparams = pltpu.CompilerParams(dimension_semantics=("parallel",))
    # TODO(synk): if batch_block/seq are scaled up, re-budget VMEM (the per-head (Bblk,S,S)
    # score tensors are fully materialized) and set vmem_limit_bytes, or switch to a
    # kv-tiled flash-style inner loop; v7x has only 64 MiB physical VMEM vs 128 MiB.

    self_attention = (q is k) and (q is v)
    if self_attention:
        # Fused QKV: one (E, 3E) weight, one (1, 3E) bias, activation passed once.
        wqkv = jnp.concatenate([wq, wk, wv], axis=1)
        bqkv = jnp.concatenate([bq, bk, bv], axis=1)
        kernel = make_mha_kernel_fused(batch_block, S, n_head, d_k, is_causal)
        out2 = pl.pallas_call(
            kernel,
            out_shape=jax.ShapeDtypeStruct((B * S, E), q.dtype),
            grid_spec=pltpu.PrefetchScalarGridSpec(
                num_scalar_prefetch=0,
                grid=(n_blocks,),
                in_specs=[x_spec,
                          pl.BlockSpec((E, 3 * E), lambda i: (0, 0)),
                          pl.BlockSpec((1, 3 * E), lambda i: (0, 0)),
                          wo_spec, bo_spec],
                out_specs=out_spec,
                scratch_shapes=scratch),
            compiler_params=cparams,
            cost_estimate=cost,
        )(q.reshape(B * S, E), wqkv, bqkv, wo, bo)
    else:
        kernel = make_mha_kernel_general(batch_block, S, n_head, d_k, is_causal)
        w_spec = pl.BlockSpec((E, E), lambda i: (0, 0))
        b_spec = pl.BlockSpec((1, E), lambda i: (0, 0))
        out2 = pl.pallas_call(
            kernel,
            out_shape=jax.ShapeDtypeStruct((B * S, E), q.dtype),
            grid_spec=pltpu.PrefetchScalarGridSpec(
                num_scalar_prefetch=0,
                grid=(n_blocks,),
                in_specs=[x_spec, x_spec, x_spec,
                          w_spec, b_spec, w_spec, b_spec, w_spec, b_spec,
                          wo_spec, bo_spec],
                out_specs=out_spec,
                scratch_shapes=scratch),
            compiler_params=cparams,
            cost_estimate=cost,
        )(q.reshape(B * S, E), k.reshape(B * S, E), v.reshape(B * S, E),
          wq, bq, wk, bk, wv, bv, wo, bo)
    return out2.reshape(B, S, E)


def reference_mha(q, k, v, params, n_head: int, is_causal: bool = False):
    """Pure-JAX (f32) reference mirroring the PyTorch module."""
    B, S, E = q.shape
    d_k = E // n_head

    def lin(x, w, b):
        return jnp.einsum("bse,oe->bso", x, w) + b

    qp = lin(q, params["wq"], params["bq"]).reshape(B, S, n_head, d_k).transpose(0, 2, 1, 3)
    kp = lin(k, params["wk"], params["bk"]).reshape(B, S, n_head, d_k).transpose(0, 2, 1, 3)
    vp = lin(v, params["wv"], params["bv"]).reshape(B, S, n_head, d_k).transpose(0, 2, 1, 3)

    att = jnp.einsum("bhqd,bhkd->bhqk", qp, kp) / np.sqrt(d_k)
    if is_causal:
        mask = jnp.triu(jnp.ones((S, S)), 1)
        att = jnp.where(mask == 1, -jnp.inf, att)
    att = jax.nn.softmax(att, axis=-1)
    out = jnp.einsum("bhqk,bhkd->bhqd", att, vp)
    out = out.transpose(0, 2, 1, 3).reshape(B, S, E)
    return lin(out, params["wo"], params["bo"])


if __name__ == "__main__":
    # config: n_embd=32, n_head=4, dropout=0.0, seq=8, batch=2
    B, S, E, H = 2, 8, 32, 4

    key = jax.random.PRNGKey(0)
    keys = jax.random.split(key, 12)

    bound = 1.0 / math.sqrt(E)  # matches nn.Linear default init range
    params = {
        "wq": jax.random.uniform(keys[0], (E, E), jnp.float32, -bound, bound),
        "bq": jax.random.uniform(keys[1], (E,), jnp.float32, -bound, bound),
        "wk": jax.random.uniform(keys[2], (E, E), jnp.float32, -bound, bound),
        "bk": jax.random.uniform(keys[3], (E,), jnp.float32, -bound, bound),
        "wv": jax.random.uniform(keys[4], (E, E), jnp.float32, -bound, bound),
        "bv": jax.random.uniform(keys[5], (E,), jnp.float32, -bound, bound),
        "wo": jax.random.uniform(keys[6], (E, E), jnp.float32, -bound, bound),
        "bo": jax.random.uniform(keys[7], (E,), jnp.float32, -bound, bound),
    }

    x = jax.random.normal(keys[8], (B, S, E), jnp.float32)
    q = jax.random.normal(keys[9], (B, S, E), jnp.float32)
    k = jax.random.normal(keys[10], (B, S, E), jnp.float32)
    v = jax.random.normal(keys[11], (B, S, E), jnp.float32)

    # tolerance reflects bf16 MXU operands (f32 accumulation, f32 softmax)
    rtol = atol = 2e-2

    for is_causal in (False, True):
        # self-attention path (fused QKV kernel, activation DMA'd once)
        out = multi_head_attention(x, x, x, params, n_head=H, is_causal=is_causal)
        out = jax.block_until_ready(out)
        ref = reference_mha(x, x, x, params, n_head=H, is_causal=is_causal)
        assert out.shape == (B, S, E)
        np.testing.assert_allclose(np.asarray(out), np.asarray(ref), rtol=rtol, atol=atol)

        # general path (separate q/k/v)
        out = multi_head_attention(q, k, v, params, n_head=H, is_causal=is_causal)
        out = jax.block_until_ready(out)
        ref = reference_mha(q, k, v, params, n_head=H, is_causal=is_causal)
        assert out.shape == (B, S, E)
        np.testing.assert_allclose(np.asarray(out), np.asarray(ref), rtol=rtol, atol=atol)

    print("KERNEL_OK")
</pallas_src>

<mosaic_0001>
module attributes {stable_mosaic.version = 11 : i64} {
  func.func @kernel(%arg0: i32, %arg1: memref<16x32xf32, #tpu.memory_space<vmem>>, %arg2: memref<32x96xf32, #tpu.memory_space<vmem>>, %arg3: memref<1x96xf32, #tpu.memory_space<vmem>>, %arg4: memref<32x32xf32, #tpu.memory_space<vmem>>, %arg5: memref<1x32xf32, #tpu.memory_space<vmem>>, %arg6: memref<16x32xf32, #tpu.memory_space<vmem>>, %arg7: memref<16x32xf32, #tpu.memory_space<vmem>>) attributes {dimension_semantics = [#tpu.dimension_semantics<parallel>], iteration_bounds = array<i64: 1>, scalar_prefetch = 0 : i64, scratch_operands = 1 : i64, tpu.core_type = #tpu.core_type<tc>, window_params = [{transform_indices = @transform_0, window_bounds = array<i64: 16, 32>}, {pipeline_mode = #tpu.pipeline_mode<synchronous>, transform_indices = @transform_1, window_bounds = array<i64: 32, 96>}, {pipeline_mode = #tpu.pipeline_mode<synchronous>, transform_indices = @transform_2, window_bounds = array<i64: 1, 96>}, {pipeline_mode = #tpu.pipeline_mode<synchronous>, transform_indices = @transform_3, window_bounds = array<i64: 32, 32>}, {pipeline_mode = #tpu.pipeline_mode<synchronous>, transform_indices = @transform_4, window_bounds = array<i64: 1, 32>}, {transform_indices = @transform_5, window_bounds = array<i64: 16, 32>}]} {
    %c0 = arith.constant 0 : index
    %c0_0 = arith.constant 0 : index
    %0 = vector.load %arg1[%c0, %c0_0] : memref<16x32xf32, #tpu.memory_space<vmem>>, vector<16x32xf32>
    %1 = arith.truncf %0 : vector<16x32xf32> to vector<16x32xbf16>
    %c0_1 = arith.constant 0 : index
    %c0_2 = arith.constant 0 : index
    %2 = vector.load %arg2[%c0_1, %c0_2] : memref<32x96xf32, #tpu.memory_space<vmem>>, vector<32x96xf32>
    %3 = arith.truncf %2 : vector<32x96xf32> to vector<32x96xbf16>
    %cst = arith.constant dense<0.000000e+00> : vector<16x96xf32>
    %4 = tpu.matmul %1, %3, %cst {dimension_numbers = #tpu.dot_dimension_numbers<[1], [0], [0], [1], [0, 0, 1, 1], [], []>} : vector<16x32xbf16>, vector<32x96xbf16>, vector<16x96xf32> -> vector<16x96xf32>
    %c0_3 = arith.constant 0 : index
    %c0_4 = arith.constant 0 : index
    %5 = vector.load %arg3[%c0_3, %c0_4] : memref<1x96xf32, #tpu.memory_space<vmem>>, vector<1x96xf32>
    %6 = vector.broadcast %5 : vector<1x96xf32> to vector<16x96xf32>
    %7 = arith.addf %4, %6 : vector<16x96xf32>
    %8 = vector.extract_strided_slice %7 {offsets = [0, 0], sizes = [16, 32], strides = [1, 1]} : vector<16x96xf32> to vector<16x32xf32>
    %9 = vector.extract_strided_slice %7 {offsets = [0, 32], sizes = [16, 32], strides = [1, 1]} : vector<16x96xf32> to vector<16x32xf32>
    %10 = vector.extract_strided_slice %7 {offsets = [0, 64], sizes = [16, 32], strides = [1, 1]} : vector<16x96xf32> to vector<16x32xf32>
    %11 = vector.shape_cast %8 : vector<16x32xf32> to vector<2x8x32xf32>
    %12 = vector.shape_cast %9 : vector<16x32xf32> to vector<2x8x32xf32>
    %13 = vector.shape_cast %10 : vector<16x32xf32> to vector<2x8x32xf32>
    %14 = vector.extract_strided_slice %11 {offsets = [0, 0, 0], sizes = [2, 8, 8], strides = [1, 1, 1]} : vector<2x8x32xf32> to vector<2x8x8xf32>
    %15 = vector.extract_strided_slice %12 {offsets = [0, 0, 0], sizes = [2, 8, 8], strides = [1, 1, 1]} : vector<2x8x32xf32> to vector<2x8x8xf32>
    %16 = vector.extract_strided_slice %13 {offsets = [0, 0, 0], sizes = [2, 8, 8], strides = [1, 1, 1]} : vector<2x8x32xf32> to vector<2x8x8xf32>
    "tpu.trace_start"() <{level = 10 : i32, message = "bqd,bkd->bqk"}> : () -> ()
    %cst_5 = arith.constant dense<0.000000e+00> : vector<2x8x8xf32>
    %17 = tpu.matmul %14, %15, %cst_5 {dimension_numbers = #tpu.dot_dimension_numbers<[2], [2], [1], [1], [0, 0, 0, 1, 1, 1], [0], [0]>} : vector<2x8x8xf32>, vector<2x8x8xf32>, vector<2x8x8xf32> -> vector<2x8x8xf32>
    "tpu.trace_stop"() : () -> ()
    %cst_6 = arith.constant dense<0xFF800000> : vector<2x8xf32>
    %18 = vector.multi_reduction <maximumf>, %17, %cst_6 [2] : vector<2x8x8xf32> to vector<2x8xf32>
    %19 = vector.shape_cast %18 : vector<2x8xf32> to vector<2x8x1xf32>
    %20 = vector.broadcast %19 : vector<2x8x1xf32> to vector<2x8x8xf32>
    %21 = arith.subf %17, %20 : vector<2x8x8xf32>
    %22 = math.exp %21 : vector<2x8x8xf32>
    %cst_7 = arith.constant dense<0.000000e+00> : vector<2x8xf32>
    %23 = vector.multi_reduction <add>, %22, %cst_7 [2] : vector<2x8x8xf32> to vector<2x8xf32>
    %24 = vector.shape_cast %23 : vector<2x8xf32> to vector<2x8x1xf32>
    %25 = vector.broadcast %24 : vector<2x8x1xf32> to vector<2x8x8xf32>
    %26 = arith.divf %22, %25 : vector<2x8x8xf32>
    %27 = arith.truncf %26 : vector<2x8x8xf32> to vector<2x8x8xbf16>
    %28 = arith.truncf %16 : vector<2x8x8xf32> to vector<2x8x8xbf16>
    "tpu.trace_start"() <{level = 10 : i32, message = "bqk,bkd->bqd"}> : () -> ()
    %cst_8 = arith.constant dense<0.000000e+00> : vector<2x8x8xf32>
    %29 = tpu.matmul %27, %28, %cst_8 {dimension_numbers = #tpu.dot_dimension_numbers<[2], [1], [1], [2], [0, 0, 0, 1, 1, 2], [0], [0]>} : vector<2x8x8xbf16>, vector<2x8x8xbf16>, vector<2x8x8xf32> -> vector<2x8x8xf32>
    "tpu.trace_stop"() : () -> ()
    %30 = vector.shape_cast %29 : vector<2x8x8xf32> to vector<16x8xf32>
    %c0_9 = arith.constant 0 : index
    %c0_10 = arith.constant 0 : index
    %31 = vector.load %arg7[%c0_9, %c0_10] : memref<16x32xf32, #tpu.memory_space<vmem>>, vector<16x8xf32>
    tpu.vector_store %arg7[%c0_9, %c0_10], %30 {strides = array<i32>} : memref<16x32xf32, #tpu.memory_space<vmem>>, vector<16x8xf32>,
    %32 = vector.extract_strided_slice %11 {offsets = [0, 0, 8], sizes = [2, 8, 8], strides = [1, 1, 1]} : vector<2x8x32xf32> to vector<2x8x8xf32>
    %33 = vector.extract_strided_slice %12 {offsets = [0, 0, 8], sizes = [2, 8, 8], strides = [1, 1, 1]} : vector<2x8x32xf32> to vector<2x8x8xf32>
    %34 = vector.extract_strided_slice %13 {offsets = [0, 0, 8], sizes = [2, 8, 8], strides = [1, 1, 1]} : vector<2x8x32xf32> to vector<2x8x8xf32>
    "tpu.trace_start"() <{level = 10 : i32, message = "bqd,bkd->bqk"}> : () -> ()
    %cst_11 = arith.constant dense<0.000000e+00> : vector<2x8x8xf32>
    %35 = tpu.matmul %32, %33, %cst_11 {dimension_numbers = #tpu.dot_dimension_numbers<[2], [2], [1], [1], [0, 0, 0, 1, 1, 1], [0], [0]>} : vector<2x8x8xf32>, vector<2x8x8xf32>, vector<2x8x8xf32> -> vector<2x8x8xf32>
    "tpu.trace_stop"() : () -> ()
    %cst_12 = arith.constant dense<0xFF800000> : vector<2x8xf32>
    %36 = vector.multi_reduction <maximumf>, %35, %cst_12 [2] : vector<2x8x8xf32> to vector<2x8xf32>
    %37 = vector.shape_cast %36 : vector<2x8xf32> to vector<2x8x1xf32>
    %38 = vector.broadcast %37 : vector<2x8x1xf32> to vector<2x8x8xf32>
    %39 = arith.subf %35, %38 : vector<2x8x8xf32>
    %40 = math.exp %39 : vector<2x8x8xf32>
    %cst_13 = arith.constant dense<0.000000e+00> : vector<2x8xf32>
    %41 = vector.multi_reduction <add>, %40, %cst_13 [2] : vector<2x8x8xf32> to vector<2x8xf32>
    %42 = vector.shape_cast %41 : vector<2x8xf32> to vector<2x8x1xf32>
    %43 = vector.broadcast %42 : vector<2x8x1xf32> to vector<2x8x8xf32>
    %44 = arith.divf %40, %43 : vector<2x8x8xf32>
    %45 = arith.truncf %44 : vector<2x8x8xf32> to vector<2x8x8xbf16>
    %46 = arith.truncf %34 : vector<2x8x8xf32> to vector<2x8x8xbf16>
    "tpu.trace_start"() <{level = 10 : i32, message = "bqk,bkd->bqd"}> : () -> ()
    %cst_14 = arith.constant dense<0.000000e+00> : vector<2x8x8xf32>
    %47 = tpu.matmul %45, %46, %cst_14 {dimension_numbers = #tpu.dot_dimension_numbers<[2], [1], [1], [2], [0, 0, 0, 1, 1, 2], [0], [0]>} : vector<2x8x8xbf16>, vector<2x8x8xbf16>, vector<2x8x8xf32> -> vector<2x8x8xf32>
    "tpu.trace_stop"() : () -> ()
    %48 = vector.shape_cast %47 : vector<2x8x8xf32> to vector<16x8xf32>
    %c0_15 = arith.constant 0 : index
    %c8 = arith.constant 8 : index
    %49 = vector.load %arg7[%c0_15, %c8] : memref<16x32xf32, #tpu.memory_space<vmem>>, vector<16x8xf32>
    tpu.vector_store %arg7[%c0_15, %c8], %48 {strides = array<i32>} : memref<16x32xf32, #tpu.memory_space<vmem>>, vector<16x8xf32>,
    %50 = vector.extract_strided_slice %11 {offsets = [0, 0, 16], sizes = [2, 8, 8], strides = [1, 1, 1]} : vector<2x8x32xf32> to vector<2x8x8xf32>
    %51 = vector.extract_strided_slice %12 {offsets = [0, 0, 16], sizes = [2, 8, 8], strides = [1, 1, 1]} : vector<2x8x32xf32> to vector<2x8x8xf32>
    %52 = vector.extract_strided_slice %13 {offsets = [0, 0, 16], sizes = [2, 8, 8], strides = [1, 1, 1]} : vector<2x8x32xf32> to vector<2x8x8xf32>
    "tpu.trace_start"() <{level = 10 : i32, message = "bqd,bkd->bqk"}> : () -> ()
    %cst_16 = arith.constant dense<0.000000e+00> : vector<2x8x8xf32>
    %53 = tpu.matmul %50, %51, %cst_16 {dimension_numbers = #tpu.dot_dimension_numbers<[2], [2], [1], [1], [0, 0, 0, 1, 1, 1], [0], [0]>} : vector<2x8x8xf32>, vector<2x8x8xf32>, vector<2x8x8xf32> -> vector<2x8x8xf32>
    "tpu.trace_stop"() : () -> ()
    %cst_17 = arith.constant dense<0xFF800000> : vector<2x8xf32>
    %54 = vector.multi_reduction <maximumf>, %53, %cst_17 [2] : vector<2x8x8xf32> to vector<2x8xf32>
    %55 = vector.shape_cast %54 : vector<2x8xf32> to vector<2x8x1xf32>
    %56 = vector.broadcast %55 : vector<2x8x1xf32> to vector<2x8x8xf32>
    %57 = arith.subf %53, %56 : vector<2x8x8xf32>
    %58 = math.exp %57 : vector<2x8x8xf32>
    %cst_18 = arith.constant dense<0.000000e+00> : vector<2x8xf32>
    %59 = vector.multi_reduction <add>, %58, %cst_18 [2] : vector<2x8x8xf32> to vector<2x8xf32>
    %60 = vector.shape_cast %59 : vector<2x8xf32> to vector<2x8x1xf32>
    %61 = vector.broadcast %60 : vector<2x8x1xf32> to vector<2x8x8xf32>
    %62 = arith.divf %58, %61 : vector<2x8x8xf32>
    %63 = arith.truncf %62 : vector<2x8x8xf32> to vector<2x8x8xbf16>
    %64 = arith.truncf %52 : vector<2x8x8xf32> to vector<2x8x8xbf16>
    "tpu.trace_start"() <{level = 10 : i32, message = "bqk,bkd->bqd"}> : () -> ()
    %cst_19 = arith.constant dense<0.000000e+00> : vector<2x8x8xf32>
    %65 = tpu.matmul %63, %64, %cst_19 {dimension_numbers = #tpu.dot_dimension_numbers<[2], [1], [1], [2], [0, 0, 0, 1, 1, 2], [0], [0]>} : vector<2x8x8xbf16>, vector<2x8x8xbf16>, vector<2x8x8xf32> -> vector<2x8x8xf32>
    "tpu.trace_stop"() : () -> ()
    %66 = vector.shape_cast %65 : vector<2x8x8xf32> to vector<16x8xf32>
    %c0_20 = arith.constant 0 : index
    %c16 = arith.constant 16 : index
    %67 = vector.load %arg7[%c0_20, %c16] : memref<16x32xf32, #tpu.memory_space<vmem>>, vector<16x8xf32>
    tpu.vector_store %arg7[%c0_20, %c16], %66 {strides = array<i32>} : memref<16x32xf32, #tpu.memory_space<vmem>>, vector<16x8xf32>,
    %68 = vector.extract_strided_slice %11 {offsets = [0, 0, 24], sizes = [2, 8, 8], strides = [1, 1, 1]} : vector<2x8x32xf32> to vector<2x8x8xf32>
    %69 = vector.extract_strided_slice %12 {offsets = [0, 0, 24], sizes = [2, 8, 8], strides = [1, 1, 1]} : vector<2x8x32xf32> to vector<2x8x8xf32>
    %70 = vector.extract_strided_slice %13 {offsets = [0, 0, 24], sizes = [2, 8, 8], strides = [1, 1, 1]} : vector<2x8x32xf32> to vector<2x8x8xf32>
    "tpu.trace_start"() <{level = 10 : i32, message = "bqd,bkd->bqk"}> : () -> ()
    %cst_21 = arith.constant dense<0.000000e+00> : vector<2x8x8xf32>
    %71 = tpu.matmul %68, %69, %cst_21 {dimension_numbers = #tpu.dot_dimension_numbers<[2], [2], [1], [1], [0, 0, 0, 1, 1, 1], [0], [0]>} : vector<2x8x8xf32>, vector<2x8x8xf32>, vector<2x8x8xf32> -> vector<2x8x8xf32>
    "tpu.trace_stop"() : () -> ()
    %cst_22 = arith.constant dense<0xFF800000> : vector<2x8xf32>
    %72 = vector.multi_reduction <maximumf>, %71, %cst_22 [2] : vector<2x8x8xf32> to vector<2x8xf32>
    %73 = vector.shape_cast %72 : vector<2x8xf32> to vector<2x8x1xf32>
    %74 = vector.broadcast %73 : vector<2x8x1xf32> to vector<2x8x8xf32>
    %75 = arith.subf %71, %74 : vector<2x8x8xf32>
    %76 = math.exp %75 : vector<2x8x8xf32>
    %cst_23 = arith.constant dense<0.000000e+00> : vector<2x8xf32>
    %77 = vector.multi_reduction <add>, %76, %cst_23 [2] : vector<2x8x8xf32> to vector<2x8xf32>
    %78 = vector.shape_cast %77 : vector<2x8xf32> to vector<2x8x1xf32>
    %79 = vector.broadcast %78 : vector<2x8x1xf32> to vector<2x8x8xf32>
    %80 = arith.divf %76, %79 : vector<2x8x8xf32>
    %81 = arith.truncf %80 : vector<2x8x8xf32> to vector<2x8x8xbf16>
    %82 = arith.truncf %70 : vector<2x8x8xf32> to vector<2x8x8xbf16>
    "tpu.trace_start"() <{level = 10 : i32, message = "bqk,bkd->bqd"}> : () -> ()
    %cst_24 = arith.constant dense<0.000000e+00> : vector<2x8x8xf32>
    %83 = tpu.matmul %81, %82, %cst_24 {dimension_numbers = #tpu.dot_dimension_numbers<[2], [1], [1], [2], [0, 0, 0, 1, 1, 2], [0], [0]>} : vector<2x8x8xbf16>, vector<2x8x8xbf16>, vector<2x8x8xf32> -> vector<2x8x8xf32>
    "tpu.trace_stop"() : () -> ()
    %84 = vector.shape_cast %83 : vector<2x8x8xf32> to vector<16x8xf32>
    %c0_25 = arith.constant 0 : index
    %c24 = arith.constant 24 : index
    %85 = vector.load %arg7[%c0_25, %c24] : memref<16x32xf32, #tpu.memory_space<vmem>>, vector<16x8xf32>
    tpu.vector_store %arg7[%c0_25, %c24], %84 {strides = array<i32>} : memref<16x32xf32, #tpu.memory_space<vmem>>, vector<16x8xf32>,
    %c0_26 = arith.constant 0 : index
    %c0_27 = arith.constant 0 : index
    %86 = vector.load %arg7[%c0_26, %c0_27] : memref<16x32xf32, #tpu.memory_space<vmem>>, vector<16x32xf32>
    %87 = arith.truncf %86 : vector<16x32xf32> to vector<16x32xbf16>
    %c0_28 = arith.constant 0 : index
    %c0_29 = arith.constant 0 : index
    %88 = vector.load %arg4[%c0_28, %c0_29] : memref<32x32xf32, #tpu.memory_space<vmem>>, vector<32x32xf32>
    %89 = arith.truncf %88 : vector<32x32xf32> to vector<32x32xbf16>
    %cst_30 = arith.constant dense<0.000000e+00> : vector<16x32xf32>
    %90 = tpu.matmul %87, %89, %cst_30 {dimension_numbers = #tpu.dot_dimension_numbers<[1], [0], [0], [1], [0, 0, 1, 1], [], []>} : vector<16x32xbf16>, vector<32x32xbf16>, vector<16x32xf32> -> vector<16x32xf32>
    %c0_31 = arith.constant 0 : index
    %c0_32 = arith.constant 0 : index
    %91 = vector.load %arg5[%c0_31, %c0_32] : memref<1x32xf32, #tpu.memory_space<vmem>>, vector<1x32xf32>
    %92 = vector.broadcast %91 : vector<1x32xf32> to vector<16x32xf32>
    %93 = arith.addf %90, %92 : vector<16x32xf32>
    %c0_33 = arith.constant 0 : index
    %c0_34 = arith.constant 0 : index
    %94 = vector.load %arg6[%c0_33, %c0_34] : memref<16x32xf32, #tpu.memory_space<vmem>>, vector<16x32xf32>
    tpu.vector_store %arg6[%c0_33, %c0_34], %93 {strides = array<i32>} : memref<16x32xf32, #tpu.memory_space<vmem>>, vector<16x32xf32>,
    return
  }
  func.func @transform_0(%arg0: i32) -> (i32, i32) {
    %c0_i32 = arith.constant 0 : i32
    %c0_i32_0 = arith.constant 0 : i32
    return %arg0, %c0_i32 : i32, i32
  }
  func.func @transform_1(%arg0: i32) -> (i32, i32) {
    %c0_i32 = arith.constant 0 : i32
    %c0_i32_0 = arith.constant 0 : i32
    %c0_i32_1 = arith.constant 0 : i32
    return %c0_i32, %c0_i32_0 : i32, i32
  }
  func.func @transform_2(%arg0: i32) -> (i32, i32) {
    %c0_i32 = arith.constant 0 : i32
    %c0_i32_0 = arith.constant 0 : i32
    %c0_i32_1 = arith.constant 0 : i32
    return %c0_i32, %c0_i32_0 : i32, i32
  }
  func.func @transform_3(%arg0: i32) -> (i32, i32) {
    %c0_i32 = arith.constant 0 : i32
    %c0_i32_0 = arith.constant 0 : i32
    %c0_i32_1 = arith.constant 0 : i32
    return %c0_i32, %c0_i32_0 : i32, i32
  }
  func.func @transform_4(%arg0: i32) -> (i32, i32) {
    %c0_i32 = arith.constant 0 : i32
    %c0_i32_0 = arith.constant 0 : i32
    %c0_i32_1 = arith.constant 0 : i32
    return %c0_i32, %c0_i32_0 : i32, i32
  }
  func.func @transform_5(%arg0: i32) -> (i32, i32) {
    %c0_i32 = arith.constant 0 : i32
    %c0_i32_0 = arith.constant 0 : i32
    return %arg0, %c0_i32 : i32, i32
  }
}

</mosaic_0001>

<llo_original>
// kernel: tpu_custom_call.1
$region0: #{tpu_custom_call.1}
  #allocation0 [shape = 'u32[]', space=smem, size = 0x4, offset = 0x4, fixed_abs, tag = 'smem constant byte address 0x4 - core index']
  #allocation1 [shape = 'u32[144,128]{1,0:T(1,128)}', space=vmem, size = 0x12000, scoped, tag = 'internal scratch']
  #allocation2 [shape = 'f32[16,32]{1,0:T(8,128)}', space=vmem, size = 0x2000, scoped, tag = 'scratch operand']
  %s0 = inlined_call_operand.hbm [shape: f32[16,32], index: 0, kind: input, shape index: {}]
  %s1 = inlined_call_operand.hbm [shape: f32[32,96], index: 1, kind: input, shape index: {}]
  %s2 = inlined_call_operand.vmem [shape: f32[1,96], index: 2, kind: input, shape index: {}]
  %s3 = inlined_call_operand.hbm [shape: f32[32,32], index: 3, kind: input, shape index: {}]
  %s4 = inlined_call_operand.vmem [shape: f32[1,32], index: 4, kind: input, shape index: {}]
  %s5 = inlined_call_operand.hbm [shape: f32[16,32], index: 5, kind: output, shape index: {}]
  %s6 = sld [smem:[#allocation0]]
  $region42: #{tpu_custom_call.1} parent=0
    _
  %s8 = ssub.s32 1, %s6
  %s9 = scalar_select 0, %s8, %s6
  $region1: #{tpu_custom_call.1} parent=0
    #allocation3 [shape = 'u8[8192]{0}', space=vmem, size = 0x2000, scoped, tag = 'input window, operand 0, single buffered']
    #allocation4 [shape = 's32[1]{0}', space=sflag, size = 0x4, scoped, tag = 'scoped memory for tpu_custom_call.1']
    #allocation5 [shape = 's32[1]{0}', space=sflag, size = 0x4, scoped, tag = 'scoped memory for tpu_custom_call.1']
    #allocation6 [shape = 'u8[16384]{0}', space=vmem, size = 0x4000, scoped, tag = 'input window, operand 1, single buffered']
    #allocation7 [shape = 's32[1]{0}', space=sflag, size = 0x4, scoped, tag = 'scoped memory for tpu_custom_call.1']
    #allocation8 [shape = 'u8[16384]{0}', space=vmem, size = 0x4000, scoped, tag = 'input window, operand 3, single buffered']
    #allocation9 [shape = 'u8[8192]{0}', space=vmem, size = 0x2000, scoped, tag = 'output window, operand 0, single buffered']
    %10 = vsyncpa [#allocation4], 0
    %11 = vsyncpa [#allocation7], 0
    %12 = vsyncpa [#allocation5], 0
    // Predicated region
    $region2: #{tpu_custom_call.1} parent=1 // pred_check
      _
    $region3: #{tpu_custom_call.1} parent=1 // pred_check_branch
      %14 = sbr.rel (0) target = $region5
    $region4: #{tpu_custom_call.1} parent=1 // pred_region
      %s16 = ssub.s32 256, 256
      %17 = vsyncadd [#allocation4], %s16
      %s18 = sshll.u32 [#allocation3], 4
      %s19 = int_to_ptr.vmem [resolvable:$true] %s18
      %24 = dma.hbm_to_vmem [thread:$0]  %s0, 256, %s19, [#allocation4], 128, 128, 8
    $region5: #{tpu_custom_call.1} parent=1 // pred_fallthru
      _
    // Predicated region
    $region6: #{tpu_custom_call.1} parent=1 // pred_check
      _
    $region7: #{tpu_custom_call.1} parent=1 // pred_check_branch
      %26 = sbr.rel (0) target = $region9
    $region8: #{tpu_custom_call.1} parent=1 // pred_region
      %s28 = ssub.s32 512, 512
      %29 = vsyncadd [#allocation7], %s28
      %s30 = sshll.u32 [#allocation6], 4
      %s31 = int_to_ptr.vmem [resolvable:$true] %s30
      %36 = dma.hbm_to_vmem [thread:$0]  %s1, 512, %s31, [#allocation7], 128, 128, 8
    $region9: #{tpu_custom_call.1} parent=1 // pred_fallthru
      _
    // Predicated region
    $region10: #{tpu_custom_call.1} parent=1 // pred_check
      _
    $region11: #{tpu_custom_call.1} parent=1 // pred_check_branch
      %38 = sbr.rel (0) target = $region13
    $region12: #{tpu_custom_call.1} parent=1 // pred_region
      _
    $region13: #{tpu_custom_call.1} parent=1 // pred_fallthru
      _
    // Predicated region
    $region14: #{tpu_custom_call.1} parent=1 // pred_check
      _
    $region15: #{tpu_custom_call.1} parent=1 // pred_check_branch
      %40 = sbr.rel (0) target = $region17
    $region16: #{tpu_custom_call.1} parent=1 // pred_region
      %s42 = ssub.s32 512, 512
      %43 = vsyncadd [#allocation7], %s42
      %s44 = sshll.u32 [#allocation8], 4
      %s45 = int_to_ptr.vmem [resolvable:$true] %s44
      %50 = dma.hbm_to_vmem [thread:$0]  %s3, 512, %s45, [#allocation7], 128, 128, 8
    $region17: #{tpu_custom_call.1} parent=1 // pred_fallthru
      _
    // Predicated region
    $region18: #{tpu_custom_call.1} parent=1 // pred_check
      _
    $region19: #{tpu_custom_call.1} parent=1 // pred_check_branch
      %52 = sbr.rel (0) target = $region21
    $region20: #{tpu_custom_call.1} parent=1 // pred_region
      _
    $region21: #{tpu_custom_call.1} parent=1 // pred_fallthru
      _
    // Predicated region
    $region22: #{tpu_custom_call.1} parent=1 // pred_check
      _
    $region23: #{tpu_custom_call.1} parent=1 // pred_check_branch
      %54 = sbr.rel (0) target = $region25
    $region24: #{tpu_custom_call.1} parent=1 // pred_region
      %55 = dma.done [#allocation4], 256
    $region25: #{tpu_custom_call.1} parent=1 // pred_fallthru
      _
    // Predicated region
    $region26: #{tpu_custom_call.1} parent=1 // pred_check
      _
    $region27: #{tpu_custom_call.1} parent=1 // pred_check_branch
      %57 = sbr.rel (0) target = $region29
    $region28: #{tpu_custom_call.1} parent=1 // pred_region
      %58 = dma.done [#allocation7], 512
    $region29: #{tpu_custom_call.1} parent=1 // pred_fallthru
      _
    // Predicated region
    $region30: #{tpu_custom_call.1} parent=1 // pred_check
      _
    $region31: #{tpu_custom_call.1} parent=1 // pred_check_branch
      %60 = sbr.rel (0) target = $region33
    $region32: #{tpu_custom_call.1} parent=1 // pred_region
      %61 = dma.done [#allocation7], 512
    $region33: #{tpu_custom_call.1} parent=1 // pred_fallthru
      _
    %v63 = vld [vmem:[#allocation3] sm:$0xff]
    %v64 = vld [vmem:[#allocation3 + $0x8] sm:$0xff]
    %v65 = vpack.c.bf16 %v64, %v63
    %v66 = vld [vmem:[#allocation6] sm:$0xff]
    %v67 = vld [vmem:[#allocation6 + $0x8] sm:$0xff]
    %v68 = vld [vmem:[#allocation6 + $0x10] sm:$0xff]
    %v69 = vld [vmem:[#allocation6 + $0x18] sm:$0xff]
    %v70 = vpack.c.bf16 %v67, %v66
    %v71 = vpack.c.bf16 %v69, %v68
    %v72 = vld [vmem:[%s2] sm:$0x1]
    %v74 = vlaneseq
    %v75 = vshrl.u32 %v74, 7
    %v76 = vsub.s32 0, %v75
    %v77 = vrot.slane %v72, %v76
    %vm79 = vcmask 261120
    %v81 = vsel %vm79, %v65, 0
    %83 = vmatprep.subr.bf16.mxu0 0
    %84 = vmatpush1.bf16.msra.mxu0 0
    %85 = vmatprep.subr.bf16.mxu0 0
    %86 = vmatpush1.bf16.msra.mxu0 0
    %87 = vmatprep.subr.bf16.mxu0 0
    %88 = vmatpush1.bf16.msra.mxu0 0
    %89 = vmatprep.subr.bf16.mxu0 0
    %90 = vmatpush1.bf16.msra.mxu0 0
    %91 = vmatprep.subr.bf16.mxu0 0
    %92 = vmatpush1.bf16.msra.mxu0 0
    %93 = vmatprep.subr.bf16.mxu0 0
    %94 = vmatpush1.bf16.msra.mxu0 0
    %95 = vmatprep.subr.bf16.mxu0 0
    %96 = vmatpush1.bf16.msra.mxu0 %v71
    %97 = vmatprep.subr.bf16.mxu0 0
    %98 = vmatpush1.bf16.msra.mxu0 %v70
    %99 = vmatprep.subr.bf16.mxu0 0
    %100 = vmatpush2.bf16.msra.mxu0 0
    %101 = vmatprep.subr.bf16.mxu0 0
    %102 = vmatpush2.bf16.msra.mxu0 0
    %103 = vmatprep.subr.bf16.mxu0 0
    %104 = vmatpush2.bf16.msra.mxu0 0
    %105 = vmatprep.subr.bf16.mxu0 0
    %106 = vmatpush2.bf16.msra.mxu0 0
    %107 = vmatprep.subr.bf16.mxu0 0
    %108 = vmatpush2.bf16.msra.mxu0 0
    %109 = vmatprep.subr.bf16.mxu0 0
    %110 = vmatpush2.bf16.msra.mxu0 0
    %111 = vmatprep.subr.bf16.mxu0 0
    %112 = vmatpush2.bf16.msra.mxu0 0
    %113 = vmatprep.subr.bf16.mxu0 0
    %114 = vmatpush2.bf16.msra.mxu0 0
    %115 = vmatprep.mubr.bf16.mxu0 0
    %116 = vmatmul.mubr.bf16.gmra.mxu0 %v81
    %v117 = vpop.f32.mrf.mxu0
    %v118 = vadd.f32 %v77, %v117
    %v119 = vpop.f32.mrf.mxu0
    %v120 = vpop.f32.mrf.mxu0
    %v121 = vadd.f32 %v77, %v120
    %v122 = vpop.f32.mrf.mxu0
    %123 = vdwg.mxu0
    %125 = vrot.lane.b32.xlu0 %v118, 96
    %v126 = vpop.permute.xlu0 %125
    %vm127 = vcmask 64512
    %v128 = vsel %vm127, %v118, 0
    %v130 = vsel %vm127, %v126, 0
    %132 = vmatprep.subr.mxu0 0.0
    %133 = vmatpush1.xpose.msra.mxu0 0.0
    %134 = vmatprep.subr.mxu0 0.0
    %135 = vmatpush1.xpose.msra.mxu0 0.0
    %136 = vmatprep.subr.mxu0 0.0
    %137 = vmatpush1.xpose.msra.mxu0 0.0
    %138 = vmatprep.subr.mxu0 0.0
    %139 = vmatpush1.xpose.msra.mxu0 0.0
    %140 = vmatprep.subr.mxu0 0.0
    %141 = vmatpush1.xpose.msra.mxu0 0.0
    %142 = vmatprep.subr.mxu0 0.0
    %143 = vmatpush1.xpose.msra.mxu0 0.0
    %144 = vmatprep.subr.mxu0 0.0
    %145 = vmatpush1.xpose.msra.mxu0 0.0
    %146 = vmatprep.subr.mxu0 0.0
    %147 = vmatpush1.xpose.msra.mxu0 0.0
    %148 = vmatprep.subr.mxu0 0.0
    %149 = vmatpush1.xpose.msra.mxu0 0.0
    %150 = vmatprep.subr.mxu0 0.0
    %151 = vmatpush1.xpose.msra.mxu0 0.0
    %152 = vmatprep.subr.mxu0 0.0
    %153 = vmatpush1.xpose.msra.mxu0 0.0
    %154 = vmatprep.subr.mxu0 0.0
    %155 = vmatpush1.xpose.msra.mxu0 0.0
    %156 = vmatprep.subr.mxu0 0.0
    %157 = vmatpush1.xpose.msra.mxu0 0.0
    %158 = vmatprep.subr.mxu0 0.0
    %159 = vmatpush1.xpose.msra.mxu0 0.0
    %160 = vmatprep.subr.mxu0 0.0
    %161 = vmatpush1.xpose.msra.mxu0 0.0
    %162 = vmatprep.subr.mxu0 0.0
    %163 = vmatpush1.xpose.msra.mxu0 %v130
    %164 = vmatprep.subr.mxu0 0.0
    %165 = vmatpush2.xpose.msra.mxu0 0.0
    %166 = vmatprep.subr.mxu0 0.0
    %167 = vmatpush2.xpose.msra.mxu0 0.0
    %168 = vmatprep.subr.mxu0 0.0
    %169 = vmatpush2.xpose.msra.mxu0 0.0
    %170 = vmatprep.subr.mxu0 0.0
    %171 = vmatpush2.xpose.msra.mxu0 0.0
    %172 = vmatprep.subr.mxu0 0.0
    %173 = vmatpush2.xpose.msra.mxu0 0.0
    %174 = vmatprep.subr.mxu0 0.0
    %175 = vmatpush2.xpose.msra.mxu0 0.0
    %176 = vmatprep.subr.mxu0 0.0
    %177 = vmatpush2.xpose.msra.mxu0 0.0
    %178 = vmatprep.subr.mxu0 0.0
    %179 = vmatpush2.xpose.msra.mxu0 0.0
    %180 = vmatprep.subr.mxu0 0.0
    %181 = vmatpush2.xpose.msra.mxu0 0.0
    %182 = vmatprep.subr.mxu0 0.0
    %183 = vmatpush2.xpose.msra.mxu0 0.0
    %184 = vmatprep.subr.mxu0 0.0
    %185 = vmatpush2.xpose.msra.mxu0 0.0
    %186 = vmatprep.subr.mxu0 0.0
    %187 = vmatpush2.xpose.msra.mxu0 0.0
    %188 = vmatprep.subr.mxu0 0.0
    %189 = vmatpush2.xpose.msra.mxu0 0.0
    %190 = vmatprep.subr.mxu0 0.0
    %191 = vmatpush2.xpose.msra.mxu0 0.0
    %192 = vmatprep.subr.mxu0 0.0
    %193 = vmatpush2.xpose.msra.mxu0 0.0
    %194 = vmatprep.subr.mxu0 0.0
    %195 = vmatpush2.xpose.msra.mxu0 0.0
    %196 = vmatprep.mubr.f32.mxu0 0.0
    %197 = vmatmul.mubr.f32.gmra.mxu0 %v128
    %v198 = vpop.f32.mrf.mxu0
    %v199 = vadd.f32 0.0, %v198
    %v200 = vpop.f32.mrf.mxu0
    %201 = vdwg.mxu0
    %203 = vrot.lane.b32.xlu0 %v121, 96
    %v204 = vpop.permute.xlu0 %203
    %v205 = vsel %vm127, %v121, 0
    %v207 = vsel %vm127, %v204, 0
    %209 = vmatprep.subr.mxu0 0.0
    %210 = vmatpush1.xpose.msra.mxu0 0.0
    %211 = vmatprep.subr.mxu0 0.0
    %212 = vmatpush1.xpose.msra.mxu0 0.0
    %213 = vmatprep.subr.mxu0 0.0
    %214 = vmatpush1.xpose.msra.mxu0 0.0
    %215 = vmatprep.subr.mxu0 0.0
    %216 = vmatpush1.xpose.msra.mxu0 0.0
    %217 = vmatprep.subr.mxu0 0.0
    %218 = vmatpush1.xpose.msra.mxu0 0.0
    %219 = vmatprep.subr.mxu0 0.0
    %220 = vmatpush1.xpose.msra.mxu0 0.0
    %221 = vmatprep.subr.mxu0 0.0
    %222 = vmatpush1.xpose.msra.mxu0 0.0
    %223 = vmatprep.subr.mxu0 0.0
    %224 = vmatpush1.xpose.msra.mxu0 0.0
    %225 = vmatprep.subr.mxu0 0.0
    %226 = vmatpush1.xpose.msra.mxu0 0.0
    %227 = vmatprep.subr.mxu0 0.0
    %228 = vmatpush1.xpose.msra.mxu0 0.0
    %229 = vmatprep.subr.mxu0 0.0
    %230 = vmatpush1.xpose.msra.mxu0 0.0
    %231 = vmatprep.subr.mxu0 0.0
    %232 = vmatpush1.xpose.msra.mxu0 0.0
    %233 = vmatprep.subr.mxu0 0.0
    %234 = vmatpush1.xpose.msra.mxu0 0.0
    %235 = vmatprep.subr.mxu0 0.0
    %236 = vmatpush1.xpose.msra.mxu0 0.0
    %237 = vmatprep.subr.mxu0 0.0
    %238 = vmatpush1.xpose.msra.mxu0 0.0
    %239 = vmatprep.subr.mxu0 0.0
    %240 = vmatpush1.xpose.msra.mxu0 %v207
    %241 = vmatprep.subr.mxu0 0.0
    %242 = vmatpush2.xpose.msra.mxu0 0.0
    %243 = vmatprep.subr.mxu0 0.0
    %244 = vmatpush2.xpose.msra.mxu0 0.0
    %245 = vmatprep.subr.mxu0 0.0
    %246 = vmatpush2.xpose.msra.mxu0 0.0
    %247 = vmatprep.subr.mxu0 0.0
    %248 = vmatpush2.xpose.msra.mxu0 0.0
    %249 = vmatprep.subr.mxu0 0.0
    %250 = vmatpush2.xpose.msra.mxu0 0.0
    %251 = vmatprep.subr.mxu0 0.0
    %252 = vmatpush2.xpose.msra.mxu0 0.0
    %253 = vmatprep.subr.mxu0 0.0
    %254 = vmatpush2.xpose.msra.mxu0 0.0
    %255 = vmatprep.subr.mxu0 0.0
    %256 = vmatpush2.xpose.msra.mxu0 0.0
    %257 = vmatprep.subr.mxu0 0.0
    %258 = vmatpush2.xpose.msra.mxu0 0.0
    %259 = vmatprep.subr.mxu0 0.0
    %260 = vmatpush2.xpose.msra.mxu0 0.0
    %261 = vmatprep.subr.mxu0 0.0
    %262 = vmatpush2.xpose.msra.mxu0 0.0
    %263 = vmatprep.subr.mxu0 0.0
    %264 = vmatpush2.xpose.msra.mxu0 0.0
    %265 = vmatprep.subr.mxu0 0.0
    %266 = vmatpush2.xpose.msra.mxu0 0.0
    %267 = vmatprep.subr.mxu0 0.0
    %268 = vmatpush2.xpose.msra.mxu0 0.0
    %269 = vmatprep.subr.mxu0 0.0
    %270 = vmatpush2.xpose.msra.mxu0 0.0
    %271 = vmatprep.subr.mxu0 0.0
    %272 = vmatpush2.xpose.msra.mxu0 0.0
    %273 = vmatprep.mubr.f32.mxu0 0.0
    %274 = vmatmul.mubr.f32.gmra.mxu0 %v205
    %v275 = vpop.f32.mrf.mxu0
    %v276 = vadd.f32 0.0, %v275
    %v277 = vpop.f32.mrf.mxu0
    %278 = vdwg.mxu0
    %v279 = vsel %vm127, %v199, -inf
    %280 = vmax.xlane.f32.xlu0 %v279
    %v281 = vpop.xlane.xlu0 %280
    %v282 = vsel %vm127, %v276, -inf
    %283 = vmax.xlane.f32.xlu0 %v282
    %v284 = vpop.xlane.xlu0 %283
    %v285 = vsub.f32 %v199, %v281
    %v286 = vsub.f32 %v276, %v284
    %v287 = vmul.f32 %v285, 1.442695
    %v288 = vpow.pop %v287
    %v289 = vmul.f32 %v286, 1.442695
    %v290 = vpow.pop %v289
    %v291 = vsel %vm127, %v288, 0.0
    %292 = vadd.xlane.f32.xlu0 %v291
    %v293 = vpop.xlane.xlu0 %292
    %v294 = vsel %vm127, %v290, 0.0
    %295 = vadd.xlane.f32.xlu0 %v294
    %v296 = vpop.xlane.xlu0 %295
    %v297 = vrcp.pop %v293
    %v298 = vmul.f32 %v288, %v297
    %v299 = vrcp.pop %v296
    %v300 = vmul.f32 %v290, %v299
    %v301 = vpack.c.bf16 %v298, %v298
    %v302 = vpack.c.bf16 %v300, %v300
    %v303 = vpack.c.bf16 %v118, %v118
    %v304 = vpack.c.bf16 %v121, %v121
    %306 = vrot.lane.b32.xlu0 %v303, 64
    %v307 = vpop.permute.xlu0 %306
    %v309 = vsel %vm127, %v301, 0
    %vm311 = vcmask 1043456
    %v313 = vsel %vm311, %v307, 0
    %315 = vmatprep.subr.bf16.mxu0 0
    %316 = vmatpush1.bf16.msra.mxu0 0
    %317 = vmatprep.subr.bf16.mxu0 0
    %318 = vmatpush1.bf16.msra.mxu0 0
    %319 = vmatprep.subr.bf16.mxu0 0
    %320 = vmatpush1.bf16.msra.mxu0 0
    %321 = vmatprep.subr.bf16.mxu0 0
    %322 = vmatpush1.bf16.msra.mxu0 0
    %323 = vmatprep.subr.bf16.mxu0 0
    %324 = vmatpush1.bf16.msra.mxu0 0
    %325 = vmatprep.subr.bf16.mxu0 0
    %326 = vmatpush1.bf16.msra.mxu0 0
    %327 = vmatprep.subr.bf16.mxu0 0
    %328 = vmatpush1.bf16.msra.mxu0 0
    %329 = vmatprep.subr.bf16.mxu0 0
    %330 = vmatpush1.bf16.msra.mxu0 %v313
    %331 = vmatprep.subr.bf16.mxu0 0
    %332 = vmatpush2.bf16.msra.mxu0 0
    %333 = vmatprep.subr.bf16.mxu0 0
    %334 = vmatpush2.bf16.msra.mxu0 0
    %335 = vmatprep.subr.bf16.mxu0 0
    %336 = vmatpush2.bf16.msra.mxu0 0
    %337 = vmatprep.subr.bf16.mxu0 0
    %338 = vmatpush2.bf16.msra.mxu0 0
    %339 = vmatprep.subr.bf16.mxu0 0
    %340 = vmatpush2.bf16.msra.mxu0 0
    %341 = vmatprep.subr.bf16.mxu0 0
    %342 = vmatpush2.bf16.msra.mxu0 0
    %343 = vmatprep.subr.bf16.mxu0 0
    %344 = vmatpush2.bf16.msra.mxu0 0
    %345 = vmatprep.subr.bf16.mxu0 0
    %346 = vmatpush2.bf16.msra.mxu0 0
    %347 = vmatprep.mubr.bf16.mxu0 0
    %348 = vmatmul.mubr.bf16.gmra.mxu0 %v309
    %v349 = vpop.f32.mrf.mxu0
    %v350 = vadd.f32 0.0, %v349
    %v351 = vpop.f32.mrf.mxu0
    %v352 = vpop.f32.mrf.mxu0
    %v353 = vpop.f32.mrf.mxu0
    %354 = vdwg.mxu0
    %356 = vrot.lane.b32.xlu0 %v304, 64
    %v357 = vpop.permute.xlu0 %356
    %v359 = vsel %vm127, %v302, 0
    %v362 = vsel %vm311, %v357, 0
    %364 = vmatprep.subr.bf16.mxu0 0
    %365 = vmatpush1.bf16.msra.mxu0 0
    %366 = vmatprep.subr.bf16.mxu0 0
    %367 = vmatpush1.bf16.msra.mxu0 0
    %368 = vmatprep.subr.bf16.mxu0 0
    %369 = vmatpush1.bf16.msra.mxu0 0
    %370 = vmatprep.subr.bf16.mxu0 0
    %371 = vmatpush1.bf16.msra.mxu0 0
    %372 = vmatprep.subr.bf16.mxu0 0
    %373 = vmatpush1.bf16.msra.mxu0 0
    %374 = vmatprep.subr.bf16.mxu0 0
    %375 = vmatpush1.bf16.msra.mxu0 0
    %376 = vmatprep.subr.bf16.mxu0 0
    %377 = vmatpush1.bf16.msra.mxu0 0
    %378 = vmatprep.subr.bf16.mxu0 0
    %379 = vmatpush1.bf16.msra.mxu0 %v362
    %380 = vmatprep.subr.bf16.mxu0 0
    %381 = vmatpush2.bf16.msra.mxu0 0
    %382 = vmatprep.subr.bf16.mxu0 0
    %383 = vmatpush2.bf16.msra.mxu0 0
    %384 = vmatprep.subr.bf16.mxu0 0
    %385 = vmatpush2.bf16.msra.mxu0 0
    %386 = vmatprep.subr.bf16.mxu0 0
    %387 = vmatpush2.bf16.msra.mxu0 0
    %388 = vmatprep.subr.bf16.mxu0 0
    %389 = vmatpush2.bf16.msra.mxu0 0
    %390 = vmatprep.subr.bf16.mxu0 0
    %391 = vmatpush2.bf16.msra.mxu0 0
    %392 = vmatprep.subr.bf16.mxu0 0
    %393 = vmatpush2.bf16.msra.mxu0 0
    %394 = vmatprep.subr.bf16.mxu0 0
    %395 = vmatpush2.bf16.msra.mxu0 0
    %396 = vmatprep.mubr.bf16.mxu0 0
    %397 = vmatmul.mubr.bf16.gmra.mxu0 %v359
    %v398 = vpop.f32.mrf.mxu0
    %v399 = vadd.f32 0.0, %v398
    %v400 = vpop.f32.mrf.mxu0
    %v401 = vpop.f32.mrf.mxu0
    %v402 = vpop.f32.mrf.mxu0
    %403 = vdwg.mxu0
    %404 = vst.msk [vmem:[#allocation2] sm:$0xff] %vm127, %v350
    %405 = vst.msk [vmem:[#allocation2 + $0x8] sm:$0xff] %vm127, %v399
    %406 = vrot.lane.b32.xlu0 %v118, 120
    %v407 = vpop.permute.xlu0 %406
    %408 = vrot.lane.b32.xlu0 %v118, 88
    %v409 = vpop.permute.xlu0 %408
    %v410 = vsel %vm127, %v407, 0
    %v412 = vsel %vm127, %v409, 0
    %414 = vmatprep.subr.mxu0 0.0
    %415 = vmatpush1.xpose.msra.mxu0 0.0
    %416 = vmatprep.subr.mxu0 0.0
    %417 = vmatpush1.xpose.msra.mxu0 0.0
    %418 = vmatprep.subr.mxu0 0.0
    %419 = vmatpush1.xpose.msra.mxu0 0.0
    %420 = vmatprep.subr.mxu0 0.0
    %421 = vmatpush1.xpose.msra.mxu0 0.0
    %422 = vmatprep.subr.mxu0 0.0
    %423 = vmatpush1.xpose.msra.mxu0 0.0
    %424 = vmatprep.subr.mxu0 0.0
    %425 = vmatpush1.xpose.msra.mxu0 0.0
    %426 = vmatprep.subr.mxu0 0.0
    %427 = vmatpush1.xpose.msra.mxu0 0.0
    %428 = vmatprep.subr.mxu0 0.0
    %429 = vmatpush1.xpose.msra.mxu0 0.0
    %430 = vmatprep.subr.mxu0 0.0
    %431 = vmatpush1.xpose.msra.mxu0 0.0
    %432 = vmatprep.subr.mxu0 0.0
    %433 = vmatpush1.xpose.msra.mxu0 0.0
    %434 = vmatprep.subr.mxu0 0.0
    %435 = vmatpush1.xpose.msra.mxu0 0.0
    %436 = vmatprep.subr.mxu0 0.0
    %437 = vmatpush1.xpose.msra.mxu0 0.0
    %438 = vmatprep.subr.mxu0 0.0
    %439 = vmatpush1.xpose.msra.mxu0 0.0
    %440 = vmatprep.subr.mxu0 0.0
    %441 = vmatpush1.xpose.msra.mxu0 0.0
    %442 = vmatprep.subr.mxu0 0.0
    %443 = vmatpush1.xpose.msra.mxu0 0.0
    %444 = vmatprep.subr.mxu0 0.0
    %445 = vmatpush1.xpose.msra.mxu0 %v412
    %446 = vmatprep.subr.mxu0 0.0
    %447 = vmatpush2.xpose.msra.mxu0 0.0
    %448 = vmatprep.subr.mxu0 0.0
    %449 = vmatpush2.xpose.msra.mxu0 0.0
    %450 = vmatprep.subr.mxu0 0.0
    %451 = vmatpush2.xpose.msra.mxu0 0.0
    %452 = vmatprep.subr.mxu0 0.0
    %453 = vmatpush2.xpose.msra.mxu0 0.0
    %454 = vmatprep.subr.mxu0 0.0
    %455 = vmatpush2.xpose.msra.mxu0 0.0
    %456 = vmatprep.subr.mxu0 0.0
    %457 = vmatpush2.xpose.msra.mxu0 0.0
    %458 = vmatprep.subr.mxu0 0.0
    %459 = vmatpush2.xpose.msra.mxu0 0.0
    %460 = vmatprep.subr.mxu0 0.0
    %461 = vmatpush2.xpose.msra.mxu0 0.0
    %462 = vmatprep.subr.mxu0 0.0
    %463 = vmatpush2.xpose.msra.mxu0 0.0
    %464 = vmatprep.subr.mxu0 0.0
    %465 = vmatpush2.xpose.msra.mxu0 0.0
    %466 = vmatprep.subr.mxu0 0.0
    %467 = vmatpush2.xpose.msra.mxu0 0.0
    %468 = vmatprep.subr.mxu0 0.0
    %469 = vmatpush2.xpose.msra.mxu0 0.0
    %470 = vmatprep.subr.mxu0 0.0
    %471 = vmatpush2.xpose.msra.mxu0 0.0
    %472 = vmatprep.subr.mxu0 0.0
    %473 = vmatpush2.xpose.msra.mxu0 0.0
    %474 = vmatprep.subr.mxu0 0.0
    %475 = vmatpush2.xpose.msra.mxu0 0.0
    %476 = vmatprep.subr.mxu0 0.0
    %477 = vmatpush2.xpose.msra.mxu0 0.0
    %478 = vmatprep.mubr.f32.mxu0 0.0
    %479 = vmatmul.mubr.f32.gmra.mxu0 %v410
    %v480 = vpop.f32.mrf.mxu0
    %v481 = vadd.f32 0.0, %v480
    %v482 = vpop.f32.mrf.mxu0
    %483 = vdwg.mxu0
    %484 = vrot.lane.b32.xlu0 %v121, 120
    %v485 = vpop.permute.xlu0 %484
    %486 = vrot.lane.b32.xlu0 %v121, 88
    %v487 = vpop.permute.xlu0 %486
    %v488 = vsel %vm127, %v485, 0
    %v490 = vsel %vm127, %v487, 0
    %492 = vmatprep.subr.mxu0 0.0
    %493 = vmatpush1.xpose.msra.mxu0 0.0
    %494 = vmatprep.subr.mxu0 0.0
    %495 = vmatpush1.xpose.msra.mxu0 0.0
    %496 = vmatprep.subr.mxu0 0.0
    %497 = vmatpush1.xpose.msra.mxu0 0.0
    %498 = vmatprep.subr.mxu0 0.0
    %499 = vmatpush1.xpose.msra.mxu0 0.0
    %500 = vmatprep.subr.mxu0 0.0
    %501 = vmatpush1.xpose.msra.mxu0 0.0
    %502 = vmatprep.subr.mxu0 0.0
    %503 = vmatpush1.xpose.msra.mxu0 0.0
    %504 = vmatprep.subr.mxu0 0.0
    %505 = vmatpush1.xpose.msra.mxu0 0.0
    %506 = vmatprep.subr.mxu0 0.0
    %507 = vmatpush1.xpose.msra.mxu0 0.0
    %508 = vmatprep.subr.mxu0 0.0
    %509 = vmatpush1.xpose.msra.mxu0 0.0
    %510 = vmatprep.subr.mxu0 0.0
    %511 = vmatpush1.xpose.msra.mxu0 0.0
    %512 = vmatprep.subr.mxu0 0.0
    %513 = vmatpush1.xpose.msra.mxu0 0.0
    %514 = vmatprep.subr.mxu0 0.0
    %515 = vmatpush1.xpose.msra.mxu0 0.0
    %516 = vmatprep.subr.mxu0 0.0
    %517 = vmatpush1.xpose.msra.mxu0 0.0
    %518 = vmatprep.subr.mxu0 0.0
    %519 = vmatpush1.xpose.msra.mxu0 0.0
    %520 = vmatprep.subr.mxu0 0.0
    %521 = vmatpush1.xpose.msra.mxu0 0.0
    %522 = vmatprep.subr.mxu0 0.0
    %523 = vmatpush1.xpose.msra.mxu0 %v490
    %524 = vmatprep.subr.mxu0 0.0
    %525 = vmatpush2.xpose.msra.mxu0 0.0
    %526 = vmatprep.subr.mxu0 0.0
    %527 = vmatpush2.xpose.msra.mxu0 0.0
    %528 = vmatprep.subr.mxu0 0.0
    %529 = vmatpush2.xpose.msra.mxu0 0.0
    %530 = vmatprep.subr.mxu0 0.0
    %531 = vmatpush2.xpose.msra.mxu0 0.0
    %532 = vmatprep.subr.mxu0 0.0
    %533 = vmatpush2.xpose.msra.mxu0 0.0
    %534 = vmatprep.subr.mxu0 0.0
    %535 = vmatpush2.xpose.msra.mxu0 0.0
    %536 = vmatprep.subr.mxu0 0.0
    %537 = vmatpush2.xpose.msra.mxu0 0.0
    %538 = vmatprep.subr.mxu0 0.0
    %539 = vmatpush2.xpose.msra.mxu0 0.0
    %540 = vmatprep.subr.mxu0 0.0
    %541 = vmatpush2.xpose.msra.mxu0 0.0
    %542 = vmatprep.subr.mxu0 0.0
    %543 = vmatpush2.xpose.msra.mxu0 0.0
    %544 = vmatprep.subr.mxu0 0.0
    %545 = vmatpush2.xpose.msra.mxu0 0.0
    %546 = vmatprep.subr.mxu0 0.0
    %547 = vmatpush2.xpose.msra.mxu0 0.0
    %548 = vmatprep.subr.mxu0 0.0
    %549 = vmatpush2.xpose.msra.mxu0 0.0
    %550 = vmatprep.subr.mxu0 0.0
    %551 = vmatpush2.xpose.msra.mxu0 0.0
    %552 = vmatprep.subr.mxu0 0.0
    %553 = vmatpush2.xpose.msra.mxu0 0.0
    %554 = vmatprep.subr.mxu0 0.0
    %555 = vmatpush2.xpose.msra.mxu0 0.0
    %556 = vmatprep.mubr.f32.mxu0 0.0
    %557 = vmatmul.mubr.f32.gmra.mxu0 %v488
    %v558 = vpop.f32.mrf.mxu0
    %v559 = vadd.f32 0.0, %v558
    %v560 = vpop.f32.mrf.mxu0
    %561 = vdwg.mxu0
    %v562 = vsel %vm127, %v481, -inf
    %563 = vmax.xlane.f32.xlu0 %v562
    %v564 = vpop.xlane.xlu0 %563
    %v565 = vsel %vm127, %v559, -inf
    %566 = vmax.xlane.f32.xlu0 %v565
    %v567 = vpop.xlane.xlu0 %566
    %v568 = vsub.f32 %v481, %v564
    %v569 = vsub.f32 %v559, %v567
    %v570 = vmul.f32 %v568, 1.442695
    %v571 = vpow.pop %v570
    %v572 = vmul.f32 %v569, 1.442695
    %v573 = vpow.pop %v572
    %v574 = vsel %vm127, %v571, 0.0
    %575 = vadd.xlane.f32.xlu0 %v574
    %v576 = vpop.xlane.xlu0 %575
    %v577 = vsel %vm127, %v573, 0.0
    %578 = vadd.xlane.f32.xlu0 %v577
    %v579 = vpop.xlane.xlu0 %578
    %v580 = vrcp.pop %v576
    %v581 = vmul.f32 %v571, %v580
    %v582 = vrcp.pop %v579
    %v583 = vmul.f32 %v573, %v582
    %v584 = vpack.c.bf16 %v581, %v581
    %v585 = vpack.c.bf16 %v583, %v583
    %586 = vrot.lane.b32.xlu0 %v303, 56
    %v587 = vpop.permute.xlu0 %586
    %v589 = vsel %vm127, %v584, 0
    %v592 = vsel %vm311, %v587, 0
    %594 = vmatprep.subr.bf16.mxu0 0
    %595 = vmatpush1.bf16.msra.mxu0 0
    %596 = vmatprep.subr.bf16.mxu0 0
    %597 = vmatpush1.bf16.msra.mxu0 0
    %598 = vmatprep.subr.bf16.mxu0 0
    %599 = vmatpush1.bf16.msra.mxu0 0
    %600 = vmatprep.subr.bf16.mxu0 0
    %601 = vmatpush1.bf16.msra.mxu0 0
    %602 = vmatprep.subr.bf16.mxu0 0
    %603 = vmatpush1.bf16.msra.mxu0 0
    %604 = vmatprep.subr.bf16.mxu0 0
    %605 = vmatpush1.bf16.msra.mxu0 0
    %606 = vmatprep.subr.bf16.mxu0 0
    %607 = vmatpush1.bf16.msra.mxu0 0
    %608 = vmatprep.subr.bf16.mxu0 0
    %609 = vmatpush1.bf16.msra.mxu0 %v592
    %610 = vmatprep.subr.bf16.mxu0 0
    %611 = vmatpush2.bf16.msra.mxu0 0
    %612 = vmatprep.subr.bf16.mxu0 0
    %613 = vmatpush2.bf16.msra.mxu0 0
    %614 = vmatprep.subr.bf16.mxu0 0
    %615 = vmatpush2.bf16.msra.mxu0 0
    %616 = vmatprep.subr.bf16.mxu0 0
    %617 = vmatpush2.bf16.msra.mxu0 0
    %618 = vmatprep.subr.bf16.mxu0 0
    %619 = vmatpush2.bf16.msra.mxu0 0
    %620 = vmatprep.subr.bf16.mxu0 0
    %621 = vmatpush2.bf16.msra.mxu0 0
    %622 = vmatprep.subr.bf16.mxu0 0
    %623 = vmatpush2.bf16.msra.mxu0 0
    %624 = vmatprep.subr.bf16.mxu0 0
    %625 = vmatpush2.bf16.msra.mxu0 0
    %626 = vmatprep.mubr.bf16.mxu0 0
    %627 = vmatmul.mubr.bf16.gmra.mxu0 %v589
    %v628 = vpop.f32.mrf.mxu0
    %v629 = vadd.f32 0.0, %v628
    %v630 = vpop.f32.mrf.mxu0
    %v631 = vpop.f32.mrf.mxu0
    %v632 = vpop.f32.mrf.mxu0
    %633 = vdwg.mxu0
    %634 = vrot.lane.b32.xlu0 %v304, 56
    %v635 = vpop.permute.xlu0 %634
    %v637 = vsel %vm127, %v585, 0
    %v640 = vsel %vm311, %v635, 0
    %642 = vmatprep.subr.bf16.mxu0 0
    %643 = vmatpush1.bf16.msra.mxu0 0
    %644 = vmatprep.subr.bf16.mxu0 0
    %645 = vmatpush1.bf16.msra.mxu0 0
    %646 = vmatprep.subr.bf16.mxu0 0
    %647 = vmatpush1.bf16.msra.mxu0 0
    %648 = vmatprep.subr.bf16.mxu0 0
    %649 = vmatpush1.bf16.msra.mxu0 0
    %650 = vmatprep.subr.bf16.mxu0 0
    %651 = vmatpush1.bf16.msra.mxu0 0
    %652 = vmatprep.subr.bf16.mxu0 0
    %653 = vmatpush1.bf16.msra.mxu0 0
    %654 = vmatprep.subr.bf16.mxu0 0
    %655 = vmatpush1.bf16.msra.mxu0 0
    %656 = vmatprep.subr.bf16.mxu0 0
    %657 = vmatpush1.bf16.msra.mxu0 %v640
    %658 = vmatprep.subr.bf16.mxu0 0
    %659 = vmatpush2.bf16.msra.mxu0 0
    %660 = vmatprep.subr.bf16.mxu0 0
    %661 = vmatpush2.bf16.msra.mxu0 0
    %662 = vmatprep.subr.bf16.mxu0 0
    %663 = vmatpush2.bf16.msra.mxu0 0
    %664 = vmatprep.subr.bf16.mxu0 0
    %665 = vmatpush2.bf16.msra.mxu0 0
    %666 = vmatprep.subr.bf16.mxu0 0
    %667 = vmatpush2.bf16.msra.mxu0 0
    %668 = vmatprep.subr.bf16.mxu0 0
    %669 = vmatpush2.bf16.msra.mxu0 0
    %670 = vmatprep.subr.bf16.mxu0 0
    %671 = vmatpush2.bf16.msra.mxu0 0
    %672 = vmatprep.subr.bf16.mxu0 0
    %673 = vmatpush2.bf16.msra.mxu0 0
    %674 = vmatprep.mubr.bf16.mxu0 0
    %675 = vmatmul.mubr.bf16.gmra.mxu0 %v637
    %v676 = vpop.f32.mrf.mxu0
    %v677 = vadd.f32 0.0, %v676
    %v678 = vpop.f32.mrf.mxu0
    %v679 = vpop.f32.mrf.mxu0
    %v680 = vpop.f32.mrf.mxu0
    %681 = vdwg.mxu0
    %684 = vrot.lane.b32.xlu0 %v629, 8
    %v685 = vpop.permute.xlu0 %684
    %686 = vrot.lane.b32.xlu0 %v677, 8
    %v687 = vpop.permute.xlu0 %686
    %vm690 = vcmask 130112
    %691 = vst.msk [vmem:[#allocation2] sm:$0xff] %vm690, %v685
    %692 = vst.msk [vmem:[#allocation2 + $0x8] sm:$0xff] %vm690, %v687
    %693 = vrot.lane.b32.xlu0 %v118, 112
    %v694 = vpop.permute.xlu0 %693
    %695 = vrot.lane.b32.xlu0 %v118, 80
    %v696 = vpop.permute.xlu0 %695
    %v697 = vsel %vm127, %v694, 0
    %v699 = vsel %vm127, %v696, 0
    %701 = vmatprep.subr.mxu0 0.0
    %702 = vmatpush1.xpose.msra.mxu0 0.0
    %703 = vmatprep.subr.mxu0 0.0
    %704 = vmatpush1.xpose.msra.mxu0 0.0
    %705 = vmatprep.subr.mxu0 0.0
    %706 = vmatpush1.xpose.msra.mxu0 0.0
    %707 = vmatprep.subr.mxu0 0.0
    %708 = vmatpush1.xpose.msra.mxu0 0.0
    %709 = vmatprep.subr.mxu0 0.0
    %710 = vmatpush1.xpose.msra.mxu0 0.0
    %711 = vmatprep.subr.mxu0 0.0
    %712 = vmatpush1.xpose.msra.mxu0 0.0
    %713 = vmatprep.subr.mxu0 0.0
    %714 = vmatpush1.xpose.msra.mxu0 0.0
    %715 = vmatprep.subr.mxu0 0.0
    %716 = vmatpush1.xpose.msra.mxu0 0.0
    %717 = vmatprep.subr.mxu0 0.0
    %718 = vmatpush1.xpose.msra.mxu0 0.0
    %719 = vmatprep.subr.mxu0 0.0
    %720 = vmatpush1.xpose.msra.mxu0 0.0
    %721 = vmatprep.subr.mxu0 0.0
    %722 = vmatpush1.xpose.msra.mxu0 0.0
    %723 = vmatprep.subr.mxu0 0.0
    %724 = vmatpush1.xpose.msra.mxu0 0.0
    %725 = vmatprep.subr.mxu0 0.0
    %726 = vmatpush1.xpose.msra.mxu0 0.0
    %727 = vmatprep.subr.mxu0 0.0
    %728 = vmatpush1.xpose.msra.mxu0 0.0
    %729 = vmatprep.subr.mxu0 0.0
    %730 = vmatpush1.xpose.msra.mxu0 0.0
    %731 = vmatprep.subr.mxu0 0.0
    %732 = vmatpush1.xpose.msra.mxu0 %v699
    %733 = vmatprep.subr.mxu0 0.0
    %734 = vmatpush2.xpose.msra.mxu0 0.0
    %735 = vmatprep.subr.mxu0 0.0
    %736 = vmatpush2.xpose.msra.mxu0 0.0
    %737 = vmatprep.subr.mxu0 0.0
    %738 = vmatpush2.xpose.msra.mxu0 0.0
    %739 = vmatprep.subr.mxu0 0.0
    %740 = vmatpush2.xpose.msra.mxu0 0.0
    %741 = vmatprep.subr.mxu0 0.0
    %742 = vmatpush2.xpose.msra.mxu0 0.0
    %743 = vmatprep.subr.mxu0 0.0
    %744 = vmatpush2.xpose.msra.mxu0 0.0
    %745 = vmatprep.subr.mxu0 0.0
    %746 = vmatpush2.xpose.msra.mxu0 0.0
    %747 = vmatprep.subr.mxu0 0.0
    %748 = vmatpush2.xpose.msra.mxu0 0.0
    %749 = vmatprep.subr.mxu0 0.0
    %750 = vmatpush2.xpose.msra.mxu0 0.0
    %751 = vmatprep.subr.mxu0 0.0
    %752 = vmatpush2.xpose.msra.mxu0 0.0
    %753 = vmatprep.subr.mxu0 0.0
    %754 = vmatpush2.xpose.msra.mxu0 0.0
    %755 = vmatprep.subr.mxu0 0.0
    %756 = vmatpush2.xpose.msra.mxu0 0.0
    %757 = vmatprep.subr.mxu0 0.0
    %758 = vmatpush2.xpose.msra.mxu0 0.0
    %759 = vmatprep.subr.mxu0 0.0
    %760 = vmatpush2.xpose.msra.mxu0 0.0
    %761 = vmatprep.subr.mxu0 0.0
    %762 = vmatpush2.xpose.msra.mxu0 0.0
    %763 = vmatprep.subr.mxu0 0.0
    %764 = vmatpush2.xpose.msra.mxu0 0.0
    %765 = vmatprep.mubr.f32.mxu0 0.0
    %766 = vmatmul.mubr.f32.gmra.mxu0 %v697
    %v767 = vpop.f32.mrf.mxu0
    %v768 = vadd.f32 0.0, %v767
    %v769 = vpop.f32.mrf.mxu0
    %770 = vdwg.mxu0
    %771 = vrot.lane.b32.xlu0 %v121, 112
    %v772 = vpop.permute.xlu0 %771
    %773 = vrot.lane.b32.xlu0 %v121, 80
    %v774 = vpop.permute.xlu0 %773
    %v775 = vsel %vm127, %v772, 0
    %v777 = vsel %vm127, %v774, 0
    %779 = vmatprep.subr.mxu0 0.0
    %780 = vmatpush1.xpose.msra.mxu0 0.0
    %781 = vmatprep.subr.mxu0 0.0
    %782 = vmatpush1.xpose.msra.mxu0 0.0
    %783 = vmatprep.subr.mxu0 0.0
    %784 = vmatpush1.xpose.msra.mxu0 0.0
    %785 = vmatprep.subr.mxu0 0.0
    %786 = vmatpush1.xpose.msra.mxu0 0.0
    %787 = vmatprep.subr.mxu0 0.0
    %788 = vmatpush1.xpose.msra.mxu0 0.0
    %789 = vmatprep.subr.mxu0 0.0
    %790 = vmatpush1.xpose.msra.mxu0 0.0
    %791 = vmatprep.subr.mxu0 0.0
    %792 = vmatpush1.xpose.msra.mxu0 0.0
    %793 = vmatprep.subr.mxu0 0.0
    %794 = vmatpush1.xpose.msra.mxu0 0.0
    %795 = vmatprep.subr.mxu0 0.0
    %796 = vmatpush1.xpose.msra.mxu0 0.0
    %797 = vmatprep.subr.mxu0 0.0
    %798 = vmatpush1.xpose.msra.mxu0 0.0
    %799 = vmatprep.subr.mxu0 0.0
    %800 = vmatpush1.xpose.msra.mxu0 0.0
    %801 = vmatprep.subr.mxu0 0.0
    %802 = vmatpush1.xpose.msra.mxu0 0.0
    %803 = vmatprep.subr.mxu0 0.0
    %804 = vmatpush1.xpose.msra.mxu0 0.0
    %805 = vmatprep.subr.mxu0 0.0
    %806 = vmatpush1.xpose.msra.mxu0 0.0
    %807 = vmatprep.subr.mxu0 0.0
    %808 = vmatpush1.xpose.msra.mxu0 0.0
    %809 = vmatprep.subr.mxu0 0.0
    %810 = vmatpush1.xpose.msra.mxu0 %v777
    %811 = vmatprep.subr.mxu0 0.0
    %812 = vmatpush2.xpose.msra.mxu0 0.0
    %813 = vmatprep.subr.mxu0 0.0
    %814 = vmatpush2.xpose.msra.mxu0 0.0
    %815 = vmatprep.subr.mxu0 0.0
    %816 = vmatpush2.xpose.msra.mxu0 0.0
    %817 = vmatprep.subr.mxu0 0.0
    %818 = vmatpush2.xpose.msra.mxu0 0.0
    %819 = vmatprep.subr.mxu0 0.0
    %820 = vmatpush2.xpose.msra.mxu0 0.0
    %821 = vmatprep.subr.mxu0 0.0
    %822 = vmatpush2.xpose.msra.mxu0 0.0
    %823 = vmatprep.subr.mxu0 0.0
    %824 = vmatpush2.xpose.msra.mxu0 0.0
    %825 = vmatprep.subr.mxu0 0.0
    %826 = vmatpush2.xpose.msra.mxu0 0.0
    %827 = vmatprep.subr.mxu0 0.0
    %828 = vmatpush2.xpose.msra.mxu0 0.0
    %829 = vmatprep.subr.mxu0 0.0
    %830 = vmatpush2.xpose.msra.mxu0 0.0
    %831 = vmatprep.subr.mxu0 0.0
    %832 = vmatpush2.xpose.msra.mxu0 0.0
    %833 = vmatprep.subr.mxu0 0.0
    %834 = vmatpush2.xpose.msra.mxu0 0.0
    %835 = vmatprep.subr.mxu0 0.0
    %836 = vmatpush2.xpose.msra.mxu0 0.0
    %837 = vmatprep.subr.mxu0 0.0
    %838 = vmatpush2.xpose.msra.mxu0 0.0
    %839 = vmatprep.subr.mxu0 0.0
    %840 = vmatpush2.xpose.msra.mxu0 0.0
    %841 = vmatprep.subr.mxu0 0.0
    %842 = vmatpush2.xpose.msra.mxu0 0.0
    %843 = vmatprep.mubr.f32.mxu0 0.0
    %844 = vmatmul.mubr.f32.gmra.mxu0 %v775
    %v845 = vpop.f32.mrf.mxu0
    %v846 = vadd.f32 0.0, %v845
    %v847 = vpop.f32.mrf.mxu0
    %848 = vdwg.mxu0
    %v849 = vsel %vm127, %v768, -inf
    %850 = vmax.xlane.f32.xlu0 %v849
    %v851 = vpop.xlane.xlu0 %850
    %v852 = vsel %vm127, %v846, -inf
    %853 = vmax.xlane.f32.xlu0 %v852
    %v854 = vpop.xlane.xlu0 %853
    %v855 = vsub.f32 %v768, %v851
    %v856 = vsub.f32 %v846, %v854
    %v857 = vmul.f32 %v855, 1.442695
    %v858 = vpow.pop %v857
    %v859 = vmul.f32 %v856, 1.442695
    %v860 = vpow.pop %v859
    %v861 = vsel %vm127, %v858, 0.0
    %862 = vadd.xlane.f32.xlu0 %v861
    %v863 = vpop.xlane.xlu0 %862
    %v864 = vsel %vm127, %v860, 0.0
    %865 = vadd.xlane.f32.xlu0 %v864
    %v866 = vpop.xlane.xlu0 %865
    %v867 = vrcp.pop %v863
    %v868 = vmul.f32 %v858, %v867
    %v869 = vrcp.pop %v866
    %v870 = vmul.f32 %v860, %v869
    %v871 = vpack.c.bf16 %v868, %v868
    %v872 = vpack.c.bf16 %v870, %v870
    %873 = vrot.lane.b32.xlu0 %v303, 48
    %v874 = vpop.permute.xlu0 %873
    %v876 = vsel %vm127, %v871, 0
    %v879 = vsel %vm311, %v874, 0
    %881 = vmatprep.subr.bf16.mxu0 0
    %882 = vmatpush1.bf16.msra.mxu0 0
    %883 = vmatprep.subr.bf16.mxu0 0
    %884 = vmatpush1.bf16.msra.mxu0 0
    %885 = vmatprep.subr.bf16.mxu0 0
    %886 = vmatpush1.bf16.msra.mxu0 0
    %887 = vmatprep.subr.bf16.mxu0 0
    %888 = vmatpush1.bf16.msra.mxu0 0
    %889 = vmatprep.subr.bf16.mxu0 0
    %890 = vmatpush1.bf16.msra.mxu0 0
    %891 = vmatprep.subr.bf16.mxu0 0
    %892 = vmatpush1.bf16.msra.mxu0 0
    %893 = vmatprep.subr.bf16.mxu0 0
    %894 = vmatpush1.bf16.msra.mxu0 0
    %895 = vmatprep.subr.bf16.mxu0 0
    %896 = vmatpush1.bf16.msra.mxu0 %v879
    %897 = vmatprep.subr.bf16.mxu0 0
    %898 = vmatpush2.bf16.msra.mxu0 0
    %899 = vmatprep.subr.bf16.mxu0 0
    %900 = vmatpush2.bf16.msra.mxu0 0
    %901 = vmatprep.subr.bf16.mxu0 0
    %902 = vmatpush2.bf16.msra.mxu0 0
    %903 = vmatprep.subr.bf16.mxu0 0
    %904 = vmatpush2.bf16.msra.mxu0 0
    %905 = vmatprep.subr.bf16.mxu0 0
    %906 = vmatpush2.bf16.msra.mxu0 0
    %907 = vmatprep.subr.bf16.mxu0 0
    %908 = vmatpush2.bf16.msra.mxu0 0
    %909 = vmatprep.subr.bf16.mxu0 0
    %910 = vmatpush2.bf16.msra.mxu0 0
    %911 = vmatprep.subr.bf16.mxu0 0
    %912 = vmatpush2.bf16.msra.mxu0 0
    %913 = vmatprep.mubr.bf16.mxu0 0
    %914 = vmatmul.mubr.bf16.gmra.mxu0 %v876
    %v915 = vpop.f32.mrf.mxu0
    %v916 = vadd.f32 0.0, %v915
    %v917 = vpop.f32.mrf.mxu0
    %v918 = vpop.f32.mrf.mxu0
    %v919 = vpop.f32.mrf.mxu0
    %920 = vdwg.mxu0
    %921 = vrot.lane.b32.xlu0 %v304, 48
    %v922 = vpop.permute.xlu0 %921
    %v924 = vsel %vm127, %v872, 0
    %v927 = vsel %vm311, %v922, 0
    %929 = vmatprep.subr.bf16.mxu0 0
    %930 = vmatpush1.bf16.msra.mxu0 0
    %931 = vmatprep.subr.bf16.mxu0 0
    %932 = vmatpush1.bf16.msra.mxu0 0
    %933 = vmatprep.subr.bf16.mxu0 0
    %934 = vmatpush1.bf16.msra.mxu0 0
    %935 = vmatprep.subr.bf16.mxu0 0
    %936 = vmatpush1.bf16.msra.mxu0 0
    %937 = vmatprep.subr.bf16.mxu0 0
    %938 = vmatpush1.bf16.msra.mxu0 0
    %939 = vmatprep.subr.bf16.mxu0 0
    %940 = vmatpush1.bf16.msra.mxu0 0
    %941 = vmatprep.subr.bf16.mxu0 0
    %942 = vmatpush1.bf16.msra.mxu0 0
    %943 = vmatprep.subr.bf16.mxu0 0
    %944 = vmatpush1.bf16.msra.mxu0 %v927
    %945 = vmatprep.subr.bf16.mxu0 0
    %946 = vmatpush2.bf16.msra.mxu0 0
    %947 = vmatprep.subr.bf16.mxu0 0
    %948 = vmatpush2.bf16.msra.mxu0 0
    %949 = vmatprep.subr.bf16.mxu0 0
    %950 = vmatpush2.bf16.msra.mxu0 0
    %951 = vmatprep.subr.bf16.mxu0 0
    %952 = vmatpush2.bf16.msra.mxu0 0
    %953 = vmatprep.subr.bf16.mxu0 0
    %954 = vmatpush2.bf16.msra.mxu0 0
    %955 = vmatprep.subr.bf16.mxu0 0
    %956 = vmatpush2.bf16.msra.mxu0 0
    %957 = vmatprep.subr.bf16.mxu0 0
    %958 = vmatpush2.bf16.msra.mxu0 0
    %959 = vmatprep.subr.bf16.mxu0 0
    %960 = vmatpush2.bf16.msra.mxu0 0
    %961 = vmatprep.mubr.bf16.mxu0 0
    %962 = vmatmul.mubr.bf16.gmra.mxu0 %v924
    %v963 = vpop.f32.mrf.mxu0
    %v964 = vadd.f32 0.0, %v963
    %v965 = vpop.f32.mrf.mxu0
    %v966 = vpop.f32.mrf.mxu0
    %v967 = vpop.f32.mrf.mxu0
    %968 = vdwg.mxu0
    %971 = vrot.lane.b32.xlu0 %v916, 16
    %v972 = vpop.permute.xlu0 %971
    %973 = vrot.lane.b32.xlu0 %v964, 16
    %v974 = vpop.permute.xlu0 %973
    %vm977 = vcmask 195712
    %978 = vst.msk [vmem:[#allocation2] sm:$0xff] %vm977, %v972
    %979 = vst.msk [vmem:[#allocation2 + $0x8] sm:$0xff] %vm977, %v974
    %980 = vrot.lane.b32.xlu0 %v118, 104
    %v981 = vpop.permute.xlu0 %980
    %982 = vrot.lane.b32.xlu0 %v118, 72
    %v983 = vpop.permute.xlu0 %982
    %v984 = vsel %vm127, %v981, 0
    %v986 = vsel %vm127, %v983, 0
    %988 = vmatprep.subr.mxu0 0.0
    %989 = vmatpush1.xpose.msra.mxu0 0.0
    %990 = vmatprep.subr.mxu0 0.0
    %991 = vmatpush1.xpose.msra.mxu0 0.0
    %992 = vmatprep.subr.mxu0 0.0
    %993 = vmatpush1.xpose.msra.mxu0 0.0
    %994 = vmatprep.subr.mxu0 0.0
    %995 = vmatpush1.xpose.msra.mxu0 0.0
    %996 = vmatprep.subr.mxu0 0.0
    %997 = vmatpush1.xpose.msra.mxu0 0.0
    %998 = vmatprep.subr.mxu0 0.0
    %999 = vmatpush1.xpose.msra.mxu0 0.0
    %1000 = vmatprep.subr.mxu0 0.0
    %1001 = vmatpush1.xpose.msra.mxu0 0.0
    %1002 = vmatprep.subr.mxu0 0.0
    %1003 = vmatpush1.xpose.msra.mxu0 0.0
    %1004 = vmatprep.subr.mxu0 0.0
    %1005 = vmatpush1.xpose.msra.mxu0 0.0
    %1006 = vmatprep.subr.mxu0 0.0
    %1007 = vmatpush1.xpose.msra.mxu0 0.0
    %1008 = vmatprep.subr.mxu0 0.0
    %1009 = vmatpush1.xpose.msra.mxu0 0.0
    %1010 = vmatprep.subr.mxu0 0.0
    %1011 = vmatpush1.xpose.msra.mxu0 0.0
    %1012 = vmatprep.subr.mxu0 0.0
    %1013 = vmatpush1.xpose.msra.mxu0 0.0
    %1014 = vmatprep.subr.mxu0 0.0
    %1015 = vmatpush1.xpose.msra.mxu0 0.0
    %1016 = vmatprep.subr.mxu0 0.0
    %1017 = vmatpush1.xpose.msra.mxu0 0.0
    %1018 = vmatprep.subr.mxu0 0.0
    %1019 = vmatpush1.xpose.msra.mxu0 %v986
    %1020 = vmatprep.subr.mxu0 0.0
    %1021 = vmatpush2.xpose.msra.mxu0 0.0
    %1022 = vmatprep.subr.mxu0 0.0
    %1023 = vmatpush2.xpose.msra.mxu0 0.0
    %1024 = vmatprep.subr.mxu0 0.0
    %1025 = vmatpush2.xpose.msra.mxu0 0.0
    %1026 = vmatprep.subr.mxu0 0.0
    %1027 = vmatpush2.xpose.msra.mxu0 0.0
    %1028 = vmatprep.subr.mxu0 0.0
    %1029 = vmatpush2.xpose.msra.mxu0 0.0
    %1030 = vmatprep.subr.mxu0 0.0
    %1031 = vmatpush2.xpose.msra.mxu0 0.0
    %1032 = vmatprep.subr.mxu0 0.0
    %1033 = vmatpush2.xpose.msra.mxu0 0.0
    %1034 = vmatprep.subr.mxu0 0.0
    %1035 = vmatpush2.xpose.msra.mxu0 0.0
    %1036 = vmatprep.subr.mxu0 0.0
    %1037 = vmatpush2.xpose.msra.mxu0 0.0
    %1038 = vmatprep.subr.mxu0 0.0
    %1039 = vmatpush2.xpose.msra.mxu0 0.0
    %1040 = vmatprep.subr.mxu0 0.0
    %1041 = vmatpush2.xpose.msra.mxu0 0.0
    %1042 = vmatprep.subr.mxu0 0.0
    %1043 = vmatpush2.xpose.msra.mxu0 0.0
    %1044 = vmatprep.subr.mxu0 0.0
    %1045 = vmatpush2.xpose.msra.mxu0 0.0
    %1046 = vmatprep.subr.mxu0 0.0
    %1047 = vmatpush2.xpose.msra.mxu0 0.0
    %1048 = vmatprep.subr.mxu0 0.0
    %1049 = vmatpush2.xpose.msra.mxu0 0.0
    %1050 = vmatprep.subr.mxu0 0.0
    %1051 = vmatpush2.xpose.msra.mxu0 0.0
    %1052 = vmatprep.mubr.f32.mxu0 0.0
    %1053 = vmatmul.mubr.f32.gmra.mxu0 %v984
    %v1054 = vpop.f32.mrf.mxu0
    %v1055 = vadd.f32 0.0, %v1054
    %v1056 = vpop.f32.mrf.mxu0
    %1057 = vdwg.mxu0
    %1058 = vrot.lane.b32.xlu0 %v121, 104
    %v1059 = vpop.permute.xlu0 %1058
    %1060 = vrot.lane.b32.xlu0 %v121, 72
    %v1061 = vpop.permute.xlu0 %1060
    %v1062 = vsel %vm127, %v1059, 0
    %v1064 = vsel %vm127, %v1061, 0
    %1066 = vmatprep.subr.mxu0 0.0
    %1067 = vmatpush1.xpose.msra.mxu0 0.0
    %1068 = vmatprep.subr.mxu0 0.0
    %1069 = vmatpush1.xpose.msra.mxu0 0.0
    %1070 = vmatprep.subr.mxu0 0.0
    %1071 = vmatpush1.xpose.msra.mxu0 0.0
    %1072 = vmatprep.subr.mxu0 0.0
    %1073 = vmatpush1.xpose.msra.mxu0 0.0
    %1074 = vmatprep.subr.mxu0 0.0
    %1075 = vmatpush1.xpose.msra.mxu0 0.0
    %1076 = vmatprep.subr.mxu0 0.0
    %1077 = vmatpush1.xpose.msra.mxu0 0.0
    %1078 = vmatprep.subr.mxu0 0.0
    %1079 = vmatpush1.xpose.msra.mxu0 0.0
    %1080 = vmatprep.subr.mxu0 0.0
    %1081 = vmatpush1.xpose.msra.mxu0 0.0
    %1082 = vmatprep.subr.mxu0 0.0
    %1083 = vmatpush1.xpose.msra.mxu0 0.0
    %1084 = vmatprep.subr.mxu0 0.0
    %1085 = vmatpush1.xpose.msra.mxu0 0.0
    %1086 = vmatprep.subr.mxu0 0.0
    %1087 = vmatpush1.xpose.msra.mxu0 0.0
    %1088 = vmatprep.subr.mxu0 0.0
    %1089 = vmatpush1.xpose.msra.mxu0 0.0
    %1090 = vmatprep.subr.mxu0 0.0
    %1091 = vmatpush1.xpose.msra.mxu0 0.0
    %1092 = vmatprep.subr.mxu0 0.0
    %1093 = vmatpush1.xpose.msra.mxu0 0.0
    %1094 = vmatprep.subr.mxu0 0.0
    %1095 = vmatpush1.xpose.msra.mxu0 0.0
    %1096 = vmatprep.subr.mxu0 0.0
    %1097 = vmatpush1.xpose.msra.mxu0 %v1064
    %1098 = vmatprep.subr.mxu0 0.0
    %1099 = vmatpush2.xpose.msra.mxu0 0.0
    %1100 = vmatprep.subr.mxu0 0.0
    %1101 = vmatpush2.xpose.msra.mxu0 0.0
    %1102 = vmatprep.subr.mxu0 0.0
    %1103 = vmatpush2.xpose.msra.mxu0 0.0
    %1104 = vmatprep.subr.mxu0 0.0
    %1105 = vmatpush2.xpose.msra.mxu0 0.0
    %1106 = vmatprep.subr.mxu0 0.0
    %1107 = vmatpush2.xpose.msra.mxu0 0.0
    %1108 = vmatprep.subr.mxu0 0.0
    %1109 = vmatpush2.xpose.msra.mxu0 0.0
    %1110 = vmatprep.subr.mxu0 0.0
    %1111 = vmatpush2.xpose.msra.mxu0 0.0
    %1112 = vmatprep.subr.mxu0 0.0
    %1113 = vmatpush2.xpose.msra.mxu0 0.0
    %1114 = vmatprep.subr.mxu0 0.0
    %1115 = vmatpush2.xpose.msra.mxu0 0.0
    %1116 = vmatprep.subr.mxu0 0.0
    %1117 = vmatpush2.xpose.msra.mxu0 0.0
    %1118 = vmatprep.subr.mxu0 0.0
    %1119 = vmatpush2.xpose.msra.mxu0 0.0
    %1120 = vmatprep.subr.mxu0 0.0
    %1121 = vmatpush2.xpose.msra.mxu0 0.0
    %1122 = vmatprep.subr.mxu0 0.0
    %1123 = vmatpush2.xpose.msra.mxu0 0.0
    %1124 = vmatprep.subr.mxu0 0.0
    %1125 = vmatpush2.xpose.msra.mxu0 0.0
    %1126 = vmatprep.subr.mxu0 0.0
    %1127 = vmatpush2.xpose.msra.mxu0 0.0
    %1128 = vmatprep.subr.mxu0 0.0
    %1129 = vmatpush2.xpose.msra.mxu0 0.0
    %1130 = vmatprep.mubr.f32.mxu0 0.0
    %1131 = vmatmul.mubr.f32.gmra.mxu0 %v1062
    %v1132 = vpop.f32.mrf.mxu0
    %v1133 = vadd.f32 0.0, %v1132
    %v1134 = vpop.f32.mrf.mxu0
    %1135 = vdwg.mxu0
    %v1136 = vsel %vm127, %v1055, -inf
    %1137 = vmax.xlane.f32.xlu0 %v1136
    %v1138 = vpop.xlane.xlu0 %1137
    %v1139 = vsel %vm127, %v1133, -inf
    %1140 = vmax.xlane.f32.xlu0 %v1139
    %v1141 = vpop.xlane.xlu0 %1140
    %v1142 = vsub.f32 %v1055, %v1138
    %v1143 = vsub.f32 %v1133, %v1141
    %v1144 = vmul.f32 %v1142, 1.442695
    %v1145 = vpow.pop %v1144
    %v1146 = vmul.f32 %v1143, 1.442695
    %v1147 = vpow.pop %v1146
    %v1148 = vsel %vm127, %v1145, 0.0
    %1149 = vadd.xlane.f32.xlu0 %v1148
    %v1150 = vpop.xlane.xlu0 %1149
    %v1151 = vsel %vm127, %v1147, 0.0
    %1152 = vadd.xlane.f32.xlu0 %v1151
    %v1153 = vpop.xlane.xlu0 %1152
    %v1154 = vrcp.pop %v1150
    %v1155 = vmul.f32 %v1145, %v1154
    %v1156 = vrcp.pop %v1153
    %v1157 = vmul.f32 %v1147, %v1156
    %v1158 = vpack.c.bf16 %v1155, %v1155
    %v1159 = vpack.c.bf16 %v1157, %v1157
    %1160 = vrot.lane.b32.xlu0 %v303, 40
    %v1161 = vpop.permute.xlu0 %1160
    %v1163 = vsel %vm127, %v1158, 0
    %v1166 = vsel %vm311, %v1161, 0
    %1168 = vmatprep.subr.bf16.mxu0 0
    %1169 = vmatpush1.bf16.msra.mxu0 0
    %1170 = vmatprep.subr.bf16.mxu0 0
    %1171 = vmatpush1.bf16.msra.mxu0 0
    %1172 = vmatprep.subr.bf16.mxu0 0
    %1173 = vmatpush1.bf16.msra.mxu0 0
    %1174 = vmatprep.subr.bf16.mxu0 0
    %1175 = vmatpush1.bf16.msra.mxu0 0
    %1176 = vmatprep.subr.bf16.mxu0 0
    %1177 = vmatpush1.bf16.msra.mxu0 0
    %1178 = vmatprep.subr.bf16.mxu0 0
    %1179 = vmatpush1.bf16.msra.mxu0 0
    %1180 = vmatprep.subr.bf16.mxu0 0
    %1181 = vmatpush1.bf16.msra.mxu0 0
    %1182 = vmatprep.subr.bf16.mxu0 0
    %1183 = vmatpush1.bf16.msra.mxu0 %v1166
    %1184 = vmatprep.subr.bf16.mxu0 0
    %1185 = vmatpush2.bf16.msra.mxu0 0
    %1186 = vmatprep.subr.bf16.mxu0 0
    %1187 = vmatpush2.bf16.msra.mxu0 0
    %1188 = vmatprep.subr.bf16.mxu0 0
    %1189 = vmatpush2.bf16.msra.mxu0 0
    %1190 = vmatprep.subr.bf16.mxu0 0
    %1191 = vmatpush2.bf16.msra.mxu0 0
    %1192 = vmatprep.subr.bf16.mxu0 0
    %1193 = vmatpush2.bf16.msra.mxu0 0
    %1194 = vmatprep.subr.bf16.mxu0 0
    %1195 = vmatpush2.bf16.msra.mxu0 0
    %1196 = vmatprep.subr.bf16.mxu0 0
    %1197 = vmatpush2.bf16.msra.mxu0 0
    %1198 = vmatprep.subr.bf16.mxu0 0
    %1199 = vmatpush2.bf16.msra.mxu0 0
    %1200 = vmatprep.mubr.bf16.mxu0 0
    %1201 = vmatmul.mubr.bf16.gmra.mxu0 %v1163
    %v1202 = vpop.f32.mrf.mxu0
    %v1203 = vadd.f32 0.0, %v1202
    %v1204 = vpop.f32.mrf.mxu0
    %v1205 = vpop.f32.mrf.mxu0
    %v1206 = vpop.f32.mrf.mxu0
    %1207 = vdwg.mxu0
    %1208 = vrot.lane.b32.xlu0 %v304, 40
    %v1209 = vpop.permute.xlu0 %1208
    %v1211 = vsel %vm127, %v1159, 0
    %v1214 = vsel %vm311, %v1209, 0
    %1216 = vmatprep.subr.bf16.mxu0 0
    %1217 = vmatpush1.bf16.msra.mxu0 0
    %1218 = vmatprep.subr.bf16.mxu0 0
    %1219 = vmatpush1.bf16.msra.mxu0 0
    %1220 = vmatprep.subr.bf16.mxu0 0
    %1221 = vmatpush1.bf16.msra.mxu0 0
    %1222 = vmatprep.subr.bf16.mxu0 0
    %1223 = vmatpush1.bf16.msra.mxu0 0
    %1224 = vmatprep.subr.bf16.mxu0 0
    %1225 = vmatpush1.bf16.msra.mxu0 0
    %1226 = vmatprep.subr.bf16.mxu0 0
    %1227 = vmatpush1.bf16.msra.mxu0 0
    %1228 = vmatprep.subr.bf16.mxu0 0
    %1229 = vmatpush1.bf16.msra.mxu0 0
    %1230 = vmatprep.subr.bf16.mxu0 0
    %1231 = vmatpush1.bf16.msra.mxu0 %v1214
    %1232 = vmatprep.subr.bf16.mxu0 0
    %1233 = vmatpush2.bf16.msra.mxu0 0
    %1234 = vmatprep.subr.bf16.mxu0 0
    %1235 = vmatpush2.bf16.msra.mxu0 0
    %1236 = vmatprep.subr.bf16.mxu0 0
    %1237 = vmatpush2.bf16.msra.mxu0 0
    %1238 = vmatprep.subr.bf16.mxu0 0
    %1239 = vmatpush2.bf16.msra.mxu0 0
    %1240 = vmatprep.subr.bf16.mxu0 0
    %1241 = vmatpush2.bf16.msra.mxu0 0
    %1242 = vmatprep.subr.bf16.mxu0 0
    %1243 = vmatpush2.bf16.msra.mxu0 0
    %1244 = vmatprep.subr.bf16.mxu0 0
    %1245 = vmatpush2.bf16.msra.mxu0 0
    %1246 = vmatprep.subr.bf16.mxu0 0
    %1247 = vmatpush2.bf16.msra.mxu0 0
    %1248 = vmatprep.mubr.bf16.mxu0 0
    %1249 = vmatmul.mubr.bf16.gmra.mxu0 %v1211
    %v1250 = vpop.f32.mrf.mxu0
    %v1251 = vadd.f32 0.0, %v1250
    %v1252 = vpop.f32.mrf.mxu0
    %v1253 = vpop.f32.mrf.mxu0
    %v1254 = vpop.f32.mrf.mxu0
    %1255 = vdwg.mxu0
    %1258 = vrot.lane.b32.xlu0 %v1203, 24
    %v1259 = vpop.permute.xlu0 %1258
    %1260 = vrot.lane.b32.xlu0 %v1251, 24
    %v1261 = vpop.permute.xlu0 %1260
    %vm1264 = vcmask 261312
    %1265 = vst.msk [vmem:[#allocation2] sm:$0xff] %vm1264, %v1259
    %1266 = vst.msk [vmem:[#allocation2 + $0x8] sm:$0xff] %vm1264, %v1261
    %v1267 = vld [vmem:[#allocation2] sm:$0xff]
    %v1268 = vld [vmem:[#allocation2 + $0x8] sm:$0xff]
    %v1269 = vpack.c.bf16 %v1268, %v1267
    %v1270 = vld [vmem:[#allocation8] sm:$0xff]
    %v1271 = vld [vmem:[#allocation8 + $0x8] sm:$0xff]
    %v1272 = vld [vmem:[#allocation8 + $0x10] sm:$0xff]
    %v1273 = vld [vmem:[#allocation8 + $0x18] sm:$0xff]
    %v1274 = vpack.c.bf16 %v1271, %v1270
    %v1275 = vpack.c.bf16 %v1273, %v1272
    %v1276 = vld [vmem:[%s4] sm:$0x1]
    %v1278 = vlaneseq
    %v1279 = vshrl.u32 %v1278, 7
    %v1280 = vsub.s32 0, %v1279
    %v1281 = vrot.slane %v1276, %v1280
    %v1284 = vsel %vm79, %v1269, 0
    %1286 = vmatprep.subr.bf16.mxu0 0
    %1287 = vmatpush1.bf16.msra.mxu0 0
    %1288 = vmatprep.subr.bf16.mxu0 0
    %1289 = vmatpush1.bf16.msra.mxu0 0
    %1290 = vmatprep.subr.bf16.mxu0 0
    %1291 = vmatpush1.bf16.msra.mxu0 0
    %1292 = vmatprep.subr.bf16.mxu0 0
    %1293 = vmatpush1.bf16.msra.mxu0 0
    %1294 = vmatprep.subr.bf16.mxu0 0
    %1295 = vmatpush1.bf16.msra.mxu0 0
    %1296 = vmatprep.subr.bf16.mxu0 0
    %1297 = vmatpush1.bf16.msra.mxu0 0
    %1298 = vmatprep.subr.bf16.mxu0 0
    %1299 = vmatpush1.bf16.msra.mxu0 %v1275
    %1300 = vmatprep.subr.bf16.mxu0 0
    %1301 = vmatpush1.bf16.msra.mxu0 %v1274
    %1302 = vmatprep.subr.bf16.mxu0 0
    %1303 = vmatpush2.bf16.msra.mxu0 0
    %1304 = vmatprep.subr.bf16.mxu0 0
    %1305 = vmatpush2.bf16.msra.mxu0 0
    %1306 = vmatprep.subr.bf16.mxu0 0
    %1307 = vmatpush2.bf16.msra.mxu0 0
    %1308 = vmatprep.subr.bf16.mxu0 0
    %1309 = vmatpush2.bf16.msra.mxu0 0
    %1310 = vmatprep.subr.bf16.mxu0 0
    %1311 = vmatpush2.bf16.msra.mxu0 0
    %1312 = vmatprep.subr.bf16.mxu0 0
    %1313 = vmatpush2.bf16.msra.mxu0 0
    %1314 = vmatprep.subr.bf16.mxu0 0
    %1315 = vmatpush2.bf16.msra.mxu0 0
    %1316 = vmatprep.subr.bf16.mxu0 0
    %1317 = vmatpush2.bf16.msra.mxu0 0
    %1318 = vmatprep.mubr.bf16.mxu0 0
    %1319 = vmatmul.mubr.bf16.gmra.mxu0 %v1284
    %v1320 = vpop.f32.mrf.mxu0
    %v1321 = vadd.f32 %v1281, %v1320
    %v1322 = vpop.f32.mrf.mxu0
    %v1323 = vpop.f32.mrf.mxu0
    %v1324 = vadd.f32 %v1281, %v1323
    %v1325 = vpop.f32.mrf.mxu0
    %1326 = vdwg.mxu0
    %1327 = vst.msk [vmem:[#allocation9] sm:$0xff] %vm79, %v1321
    %1328 = vst.msk [vmem:[#allocation9 + $0x8] sm:$0xff] %vm79, %v1324
    // Predicated region
    $region34: #{tpu_custom_call.1} parent=1 // pred_check
      _
    $region35: #{tpu_custom_call.1} parent=1 // pred_check_branch
      %1330 = sbr.rel (0) target = $region37
    $region36: #{tpu_custom_call.1} parent=1 // pred_region
      %s1332 = ssub.s32 256, 256
      %1333 = vsyncadd [#allocation5], %s1332
      %s1334 = sshll.u32 [#allocation9], 4
      %s1335 = int_to_ptr.vmem [resolvable:$true] %s1334
      %1340 = dma.vmem_to_hbm [thread:$0]  %s1335, 256, %s5, [#allocation5], 128, 128, 8
    $region37: #{tpu_custom_call.1} parent=1 // pred_fallthru
      _
    // Predicated region
    $region38: #{tpu_custom_call.1} parent=1 // pred_check
      _
    $region39: #{tpu_custom_call.1} parent=1 // pred_check_branch
      %1342 = sbr.rel (0) target = $region41
    $region40: #{tpu_custom_call.1} parent=1 // pred_region
      %1343 = dma.done [#allocation5], 256
    $region41: #{tpu_custom_call.1} parent=1 // pred_fallthru
      _
    %1344 = vsyncpa [#allocation4], 1
    %1345 = vsyncpa [#allocation7], 1
    %1346 = vsyncpa [#allocation5], 1

</llo_original>
